<compile_context>
chip_gen: v6e
topology: v6e:2x2x1
jax: 0.10.0
libtpu: 0.0.40
codegen_flags: <defaults>
</compile_context>

<pallas_src>
import functools

import jax
import jax.numpy as jnp
from jax.experimental import pallas as pl
from jax.experimental.pallas import tpu as pltpu

POOL_K = 5
POOL_S = 3
CONV_OUT = 128
FC1_IN = 2048
FC1_OUT = 1024
FC1_TILE = 256                       # fc1 output-column tile (grid axis)


def inception_aux_kernel(x_ref, pm_ref, wc_ref, bc_ref, w1_ref, b1_ref,
                         w2_ref, b2_ref, out_ref, flat_ref, *,
                         n_batch, n_pix):
    j = pl.program_id(0)

    @pl.when(j == 0)
    def _init():
        # AvgPool(5, stride 3) for all batches at once: block-diag pooling
        # matrix (N*P, N*HW) @ NHWC-flat x (N*HW, C) -> conv input (N*P, C).
        conv_in = jnp.dot(pm_ref[...], x_ref[...],
                          preferred_element_type=jnp.float32)    # (N*P, C)
        # 1x1 conv + bias + ReLU as one MXU matmul over M = N*oh*ow rows.
        z = jnp.dot(conv_in, wc_ref[...],
                    preferred_element_type=jnp.float32) + bc_ref[...]
        z = jnp.maximum(z, 0.0)                                   # (N*P, 128)
        # Flatten pixel-major (col = p*128 + k); the host permuted w1 columns
        # to match.  Only 16 KiB of vreg traffic, runs once at j == 0.
        rows = []
        for b in range(n_batch):
            rows.append(jnp.concatenate(
                [z[b * n_pix + p:b * n_pix + p + 1, :] for p in range(n_pix)],
                axis=-1))                                         # (1, 2048)
        flat = jnp.concatenate(rows, axis=0)                      # (N, 2048)
        # TODO(synk): dropout(p=0.5) is identity in eval mode; training-mode
        # RNG masking is not implemented.
        flat_ref[...] = flat.astype(flat_ref.dtype)               # bf16 scratch
        out_ref[...] = jnp.zeros_like(out_ref)

    # fc1 tile: (N, 2048) @ (2048, FC1_TILE) in bf16, f32 accumulate + ReLU.
    h1 = jnp.dot(flat_ref[...], w1_ref[...],
                 preferred_element_type=jnp.float32) + b1_ref[...]
    h1 = jnp.maximum(h1, 0.0)                                     # (N, tile)

    # fc2 partial: accumulate (N, tile) @ (tile, ncp) into resident output.
    out_ref[...] += jnp.dot(h1.astype(jnp.bfloat16), w2_ref[...],
                            preferred_element_type=jnp.float32)

    @pl.when(j == pl.num_programs(0) - 1)
    def _finalize():
        out_ref[...] += b2_ref[...]


def inception_aux(x, params, num_classes):
    N, C, H, W = x.shape
    oh = (H - POOL_K) // POOL_S + 1
    ow = (W - POOL_K) // POOL_S + 1
    n_pix = oh * ow
    hw = H * W
    assert CONV_OUT * n_pix == FC1_IN, "spatial size must yield 2048 features"
    assert FC1_OUT % FC1_TILE == 0
    ncp = ((num_classes + 127) // 128) * 128     # pad classes to lane width

    # ---- host-side layout prep (relayout / cast only, no real compute) ------
    # Per-window pooling matrix: pm_t[p, q] = 1/25 if pixel q is in window p.
    hh = jnp.arange(hw) // W
    ww = jnp.arange(hw) % W
    hs = jnp.arange(oh) * POOL_S
    ws = jnp.arange(ow) * POOL_S
    in_h = (hh[:, None] >= hs[None, :]) & (hh[:, None] < hs[None, :] + POOL_K)
    in_w = (ww[:, None] >= ws[None, :]) & (ww[:, None] < ws[None, :] + POOL_K)
    pm = (in_h[:, :, None] & in_w[:, None, :]).reshape(hw, n_pix)
    pm_t = (pm.astype(jnp.float32) / float(POOL_K * POOL_K)).T       # (P, HW)
    # Block-diagonal over the batch so pooling is a single matmul per call.
    pm_block = jnp.kron(jnp.eye(N, dtype=jnp.float32), pm_t)    # (N*P, N*HW)

    # NHWC-flat x: row n*HW + q holds the C channels of pixel q of batch n.
    x_t = x.transpose(0, 2, 3, 1).reshape(N * hw, C).astype(jnp.float32)

    wc_t = params["conv_w"].reshape(CONV_OUT, C).T.astype(jnp.float32)
    bc = params["conv_b"].reshape(1, CONV_OUT).astype(jnp.float32)

    # fc1 weight: permute columns channel-major -> pixel-major, transpose, bf16.
    w1 = params["fc1_w"].reshape(FC1_OUT, CONV_OUT, n_pix)
    w1 = jnp.transpose(w1, (0, 2, 1)).reshape(FC1_OUT, FC1_IN)
    w1_t = w1.T.astype(jnp.bfloat16)                             # (2048, 1024)
    b1 = params["fc1_b"].reshape(1, FC1_OUT).astype(jnp.float32)

    # fc2: transpose + zero-pad output columns to a lane-dense multiple of 128.
    w2_t = jnp.pad(params["fc2_w"].T,
                   ((0, 0), (0, ncp - num_classes))).astype(jnp.bfloat16)
    b2 = jnp.pad(params["fc2_b"],
                 (0, ncp - num_classes)).reshape(1, ncp).astype(jnp.float32)

    kernel = functools.partial(inception_aux_kernel, n_batch=N, n_pix=n_pix)

    flops = 2 * (N * n_pix * N * hw * C + N * n_pix * C * CONV_OUT
                 + N * FC1_IN * FC1_OUT + N * FC1_OUT * ncp)
    bytes_accessed = (x_t.size * 4 + pm_block.size * 4 + wc_t.size * 4
                      + bc.size * 4 + w1_t.size * 2 + b1.size * 4
                      + w2_t.size * 2 + b2.size * 4 + N * ncp * 4)

    out_padded = pl.pallas_call(
        kernel,
        out_shape=jax.ShapeDtypeStruct((N, ncp), jnp.float32),
        grid_spec=pltpu.PrefetchScalarGridSpec(
            num_scalar_prefetch=0,
            grid=(FC1_OUT // FC1_TILE,),
            in_specs=[
                pl.BlockSpec((N * hw, C), lambda j: (0, 0)),          # x_t
                pl.BlockSpec((N * n_pix, N * hw), lambda j: (0, 0)),  # pm_block
                pl.BlockSpec((C, CONV_OUT), lambda j: (0, 0)),        # wc_t
                pl.BlockSpec((1, CONV_OUT), lambda j: (0, 0)),        # bc
                pl.BlockSpec((FC1_IN, FC1_TILE), lambda j: (0, j)),   # w1 tile
                pl.BlockSpec((1, FC1_TILE), lambda j: (0, j)),        # b1 tile
                pl.BlockSpec((FC1_TILE, ncp), lambda j: (j, 0)),      # w2 tile
                pl.BlockSpec((1, ncp), lambda j: (0, 0)),             # b2
            ],
            out_specs=pl.BlockSpec((N, ncp), lambda j: (0, 0)),
            scratch_shapes=[pltpu.VMEM((N, FC1_IN), jnp.bfloat16)],
        ),
        compiler_params=pltpu.CompilerParams(
            dimension_semantics=("arbitrary",)),
        cost_estimate=pl.CostEstimate(flops=int(flops), transcendentals=0,
                                      bytes_accessed=int(bytes_accessed)),
    )(x_t, pm_block, wc_t, bc, w1_t, b1, w2_t, b2)
    return out_padded[:, :num_classes]


def ref_forward(x, params):
    """Plain-JAX reference matching PyTorch semantics (eval mode)."""
    N, C, H, W = x.shape
    oh = (H - POOL_K) // POOL_S + 1
    ow = (W - POOL_K) // POOL_S + 1
    pooled = jnp.stack([
        jnp.stack([
            jnp.mean(x[:, :, i * POOL_S:i * POOL_S + POOL_K,
                           j * POOL_S:j * POOL_S + POOL_K], axis=(2, 3))
            for j in range(ow)], axis=-1)
        for i in range(oh)], axis=-2)                            # (N, C, oh, ow)
    z = jnp.einsum('nchw,kc->nkhw', pooled,
                   params["conv_w"].reshape(CONV_OUT, C))
    z = jax.nn.relu(z + params["conv_b"][None, :, None, None])
    flat = z.reshape(N, -1)                                      # channel-major
    h1 = jax.nn.relu(flat @ params["fc1_w"].T + params["fc1_b"])
    return h1 @ params["fc2_w"].T + params["fc2_b"]


if __name__ == "__main__":
    batch, in_channels, spatial, num_classes = 2, 16, 14, 10

    key = jax.random.PRNGKey(0)
    kx, k1, k2, k3, k4, k5, k6 = jax.random.split(key, 7)
    x = jax.random.normal(kx, (batch, in_channels, spatial, spatial),
                          dtype=jnp.float32)
    params = {
        "conv_w": 0.05 * jax.random.normal(k1, (CONV_OUT, in_channels, 1, 1),
                                           dtype=jnp.float32),
        "conv_b": 0.01 * jax.random.normal(k2, (CONV_OUT,), dtype=jnp.float32),
        "fc1_w": 0.02 * jax.random.normal(k3, (FC1_OUT, FC1_IN),
                                          dtype=jnp.float32),
        "fc1_b": 0.01 * jax.random.normal(k4, (FC1_OUT,), dtype=jnp.float32),
        "fc2_w": 0.02 * jax.random.normal(k5, (num_classes, FC1_OUT),
                                          dtype=jnp.float32),
        "fc2_b": 0.01 * jax.random.normal(k6, (num_classes,),
                                          dtype=jnp.float32),
    }

    out = inception_aux(x, params, num_classes)
    out = jax.block_until_ready(out)

    ref = ref_forward(x, params)
    assert out.shape == (batch, num_classes)
    assert jnp.allclose(out, ref, rtol=2e-3, atol=2e-3), (
        f"max abs err {jnp.max(jnp.abs(out - ref))}")
    print("KERNEL_OK")
</pallas_src>

<mosaic_0001>
module attributes {stable_mosaic.version = 11 : i64} {
  func.func @inception_aux_kernel(%arg0: i32, %arg1: memref<392x16xf32, #tpu.memory_space<vmem>>, %arg2: memref<32x392xf32, #tpu.memory_space<vmem>>, %arg3: memref<16x128xf32, #tpu.memory_space<vmem>>, %arg4: memref<1x128xf32, #tpu.memory_space<vmem>>, %arg5: memref<2048x256xbf16, #tpu.memory_space<vmem>>, %arg6: memref<1x256xf32, #tpu.memory_space<vmem>>, %arg7: memref<256x128xbf16, #tpu.memory_space<vmem>>, %arg8: memref<1x128xf32, #tpu.memory_space<vmem>>, %arg9: memref<2x128xf32, #tpu.memory_space<vmem>>, %arg10: memref<2x2048xbf16, #tpu.memory_space<vmem>>) attributes {dimension_semantics = [#tpu.dimension_semantics<arbitrary>], iteration_bounds = array<i64: 4>, scalar_prefetch = 0 : i64, scratch_operands = 1 : i64, tpu.core_type = #tpu.core_type<tc>, window_params = [{pipeline_mode = #tpu.pipeline_mode<synchronous>, transform_indices = @transform_0, window_bounds = array<i64: 392, 16>}, {pipeline_mode = #tpu.pipeline_mode<synchronous>, transform_indices = @transform_1, window_bounds = array<i64: 32, 392>}, {pipeline_mode = #tpu.pipeline_mode<synchronous>, transform_indices = @transform_2, window_bounds = array<i64: 16, 128>}, {pipeline_mode = #tpu.pipeline_mode<synchronous>, transform_indices = @transform_3, window_bounds = array<i64: 1, 128>}, {transform_indices = @transform_4, window_bounds = array<i64: 2048, 256>}, {transform_indices = @transform_5, window_bounds = array<i64: 1, 256>}, {transform_indices = @transform_6, window_bounds = array<i64: 256, 128>}, {pipeline_mode = #tpu.pipeline_mode<synchronous>, transform_indices = @transform_7, window_bounds = array<i64: 1, 128>}, {pipeline_mode = #tpu.pipeline_mode<synchronous>, transform_indices = @transform_8, window_bounds = array<i64: 2, 128>}]} {
    %c0_i32 = arith.constant 0 : i32
    %0 = arith.cmpi eq, %arg0, %c0_i32 : i32
    %1 = arith.extui %0 : i1 to i32
    %c0_i32_0 = arith.constant 0 : i32
    %2 = arith.cmpi ne, %1, %c0_i32_0 : i32
    scf.if %2 {
      %c0_15 = arith.constant 0 : index
      %c0_16 = arith.constant 0 : index
      %20 = vector.load %arg2[%c0_15, %c0_16] : memref<32x392xf32, #tpu.memory_space<vmem>>, vector<32x392xf32>
      %c0_17 = arith.constant 0 : index
      %c0_18 = arith.constant 0 : index
      %21 = vector.load %arg1[%c0_17, %c0_18] : memref<392x16xf32, #tpu.memory_space<vmem>>, vector<392x16xf32>
      %cst_19 = arith.constant dense<0.000000e+00> : vector<32x16xf32>
      %22 = tpu.matmul %20, %21, %cst_19 {dimension_numbers = #tpu.dot_dimension_numbers<[1], [0], [0], [1], [0, 0, 1, 1], [], []>} : vector<32x392xf32>, vector<392x16xf32>, vector<32x16xf32> -> vector<32x16xf32>
      %c0_20 = arith.constant 0 : index
      %c0_21 = arith.constant 0 : index
      %23 = vector.load %arg3[%c0_20, %c0_21] : memref<16x128xf32, #tpu.memory_space<vmem>>, vector<16x128xf32>
      %cst_22 = arith.constant dense<0.000000e+00> : vector<32x128xf32>
      %24 = tpu.matmul %22, %23, %cst_22 {dimension_numbers = #tpu.dot_dimension_numbers<[1], [0], [0], [1], [0, 0, 1, 1], [], []>} : vector<32x16xf32>, vector<16x128xf32>, vector<32x128xf32> -> vector<32x128xf32>
      %c0_23 = arith.constant 0 : index
      %c0_24 = arith.constant 0 : index
      %25 = vector.load %arg4[%c0_23, %c0_24] : memref<1x128xf32, #tpu.memory_space<vmem>>, vector<1x128xf32>
      %26 = vector.broadcast %25 : vector<1x128xf32> to vector<32x128xf32>
      %27 = arith.addf %24, %26 : vector<32x128xf32>
      %cst_25 = arith.constant 0.000000e+00 : f32
      %28 = vector.broadcast %cst_25 : f32 to vector<32x128xf32>
      %29 = arith.maximumf %27, %28 : vector<32x128xf32>
      %30 = vector.extract_strided_slice %29 {offsets = [0, 0], sizes = [1, 128], strides = [1, 1]} : vector<32x128xf32> to vector<1x128xf32>
      %31 = vector.extract_strided_slice %29 {offsets = [1, 0], sizes = [1, 128], strides = [1, 1]} : vector<32x128xf32> to vector<1x128xf32>
      %32 = vector.extract_strided_slice %29 {offsets = [2, 0], sizes = [1, 128], strides = [1, 1]} : vector<32x128xf32> to vector<1x128xf32>
      %33 = vector.extract_strided_slice %29 {offsets = [3, 0], sizes = [1, 128], strides = [1, 1]} : vector<32x128xf32> to vector<1x128xf32>
      %34 = vector.extract_strided_slice %29 {offsets = [4, 0], sizes = [1, 128], strides = [1, 1]} : vector<32x128xf32> to vector<1x128xf32>
      %35 = vector.extract_strided_slice %29 {offsets = [5, 0], sizes = [1, 128], strides = [1, 1]} : vector<32x128xf32> to vector<1x128xf32>
      %36 = vector.extract_strided_slice %29 {offsets = [6, 0], sizes = [1, 128], strides = [1, 1]} : vector<32x128xf32> to vector<1x128xf32>
      %37 = vector.extract_strided_slice %29 {offsets = [7, 0], sizes = [1, 128], strides = [1, 1]} : vector<32x128xf32> to vector<1x128xf32>
      %38 = vector.extract_strided_slice %29 {offsets = [8, 0], sizes = [1, 128], strides = [1, 1]} : vector<32x128xf32> to vector<1x128xf32>
      %39 = vector.extract_strided_slice %29 {offsets = [9, 0], sizes = [1, 128], strides = [1, 1]} : vector<32x128xf32> to vector<1x128xf32>
      %40 = vector.extract_strided_slice %29 {offsets = [10, 0], sizes = [1, 128], strides = [1, 1]} : vector<32x128xf32> to vector<1x128xf32>
      %41 = vector.extract_strided_slice %29 {offsets = [11, 0], sizes = [1, 128], strides = [1, 1]} : vector<32x128xf32> to vector<1x128xf32>
      %42 = vector.extract_strided_slice %29 {offsets = [12, 0], sizes = [1, 128], strides = [1, 1]} : vector<32x128xf32> to vector<1x128xf32>
      %43 = vector.extract_strided_slice %29 {offsets = [13, 0], sizes = [1, 128], strides = [1, 1]} : vector<32x128xf32> to vector<1x128xf32>
      %44 = vector.extract_strided_slice %29 {offsets = [14, 0], sizes = [1, 128], strides = [1, 1]} : vector<32x128xf32> to vector<1x128xf32>
      %45 = vector.extract_strided_slice %29 {offsets = [15, 0], sizes = [1, 128], strides = [1, 1]} : vector<32x128xf32> to vector<1x128xf32>
      %46 = tpu.concatenate %30, %31, %32, %33, %34, %35, %36, %37, %38, %39, %40, %41, %42, %43, %44, %45 in 1 : vector<1x128xf32>, vector<1x128xf32>, vector<1x128xf32>, vector<1x128xf32>, vector<1x128xf32>, vector<1x128xf32>, vector<1x128xf32>, vector<1x128xf32>, vector<1x128xf32>, vector<1x128xf32>, vector<1x128xf32>, vector<1x128xf32>, vector<1x128xf32>, vector<1x128xf32>, vector<1x128xf32>, vector<1x128xf32> -> vector<1x2048xf32>
      %47 = vector.extract_strided_slice %29 {offsets = [16, 0], sizes = [1, 128], strides = [1, 1]} : vector<32x128xf32> to vector<1x128xf32>
      %48 = vector.extract_strided_slice %29 {offsets = [17, 0], sizes = [1, 128], strides = [1, 1]} : vector<32x128xf32> to vector<1x128xf32>
      %49 = vector.extract_strided_slice %29 {offsets = [18, 0], sizes = [1, 128], strides = [1, 1]} : vector<32x128xf32> to vector<1x128xf32>
      %50 = vector.extract_strided_slice %29 {offsets = [19, 0], sizes = [1, 128], strides = [1, 1]} : vector<32x128xf32> to vector<1x128xf32>
      %51 = vector.extract_strided_slice %29 {offsets = [20, 0], sizes = [1, 128], strides = [1, 1]} : vector<32x128xf32> to vector<1x128xf32>
      %52 = vector.extract_strided_slice %29 {offsets = [21, 0], sizes = [1, 128], strides = [1, 1]} : vector<32x128xf32> to vector<1x128xf32>
      %53 = vector.extract_strided_slice %29 {offsets = [22, 0], sizes = [1, 128], strides = [1, 1]} : vector<32x128xf32> to vector<1x128xf32>
      %54 = vector.extract_strided_slice %29 {offsets = [23, 0], sizes = [1, 128], strides = [1, 1]} : vector<32x128xf32> to vector<1x128xf32>
      %55 = vector.extract_strided_slice %29 {offsets = [24, 0], sizes = [1, 128], strides = [1, 1]} : vector<32x128xf32> to vector<1x128xf32>
      %56 = vector.extract_strided_slice %29 {offsets = [25, 0], sizes = [1, 128], strides = [1, 1]} : vector<32x128xf32> to vector<1x128xf32>
      %57 = vector.extract_strided_slice %29 {offsets = [26, 0], sizes = [1, 128], strides = [1, 1]} : vector<32x128xf32> to vector<1x128xf32>
      %58 = vector.extract_strided_slice %29 {offsets = [27, 0], sizes = [1, 128], strides = [1, 1]} : vector<32x128xf32> to vector<1x128xf32>
      %59 = vector.extract_strided_slice %29 {offsets = [28, 0], sizes = [1, 128], strides = [1, 1]} : vector<32x128xf32> to vector<1x128xf32>
      %60 = vector.extract_strided_slice %29 {offsets = [29, 0], sizes = [1, 128], strides = [1, 1]} : vector<32x128xf32> to vector<1x128xf32>
      %61 = vector.extract_strided_slice %29 {offsets = [30, 0], sizes = [1, 128], strides = [1, 1]} : vector<32x128xf32> to vector<1x128xf32>
      %62 = vector.extract_strided_slice %29 {offsets = [31, 0], sizes = [1, 128], strides = [1, 1]} : vector<32x128xf32> to vector<1x128xf32>
      %63 = tpu.concatenate %47, %48, %49, %50, %51, %52, %53, %54, %55, %56, %57, %58, %59, %60, %61, %62 in 1 : vector<1x128xf32>, vector<1x128xf32>, vector<1x128xf32>, vector<1x128xf32>, vector<1x128xf32>, vector<1x128xf32>, vector<1x128xf32>, vector<1x128xf32>, vector<1x128xf32>, vector<1x128xf32>, vector<1x128xf32>, vector<1x128xf32>, vector<1x128xf32>, vector<1x128xf32>, vector<1x128xf32>, vector<1x128xf32> -> vector<1x2048xf32>
      %64 = tpu.concatenate %46, %63 in 0 : vector<1x2048xf32>, vector<1x2048xf32> -> vector<2x2048xf32>
      %65 = arith.truncf %64 : vector<2x2048xf32> to vector<2x2048xbf16>
      %c0_26 = arith.constant 0 : index
      %c0_27 = arith.constant 0 : index
      %66 = vector.load %arg10[%c0_26, %c0_27] : memref<2x2048xbf16, #tpu.memory_space<vmem>>, vector<2x2048xbf16>
      tpu.vector_store %arg10[%c0_26, %c0_27], %65 {strides = array<i32>} : memref<2x2048xbf16, #tpu.memory_space<vmem>>, vector<2x2048xbf16>,
      %cst_28 = arith.constant 0.000000e+00 : f32
      %67 = vector.broadcast %cst_28 : f32 to vector<2x128xf32>
      %c0_29 = arith.constant 0 : index
      %c0_30 = arith.constant 0 : index
      %68 = vector.load %arg9[%c0_29, %c0_30] : memref<2x128xf32, #tpu.memory_space<vmem>>, vector<2x128xf32>
      tpu.vector_store %arg9[%c0_29, %c0_30], %67 {strides = array<i32>} : memref<2x128xf32, #tpu.memory_space<vmem>>, vector<2x128xf32>,
    } else {
    }
    %c0 = arith.constant 0 : index
    %c0_1 = arith.constant 0 : index
    %3 = vector.load %arg10[%c0, %c0_1] : memref<2x2048xbf16, #tpu.memory_space<vmem>>, vector<2x2048xbf16>
    %c0_2 = arith.constant 0 : index
    %c0_3 = arith.constant 0 : index
    %4 = vector.load %arg5[%c0_2, %c0_3] : memref<2048x256xbf16, #tpu.memory_space<vmem>>, vector<2048x256xbf16>
    %cst = arith.constant dense<0.000000e+00> : vector<2x256xf32>
    %5 = tpu.matmul %3, %4, %cst {dimension_numbers = #tpu.dot_dimension_numbers<[1], [0], [0], [1], [0, 0, 1, 1], [], []>} : vector<2x2048xbf16>, vector<2048x256xbf16>, vector<2x256xf32> -> vector<2x256xf32>
    %c0_4 = arith.constant 0 : index
    %c0_5 = arith.constant 0 : index
    %6 = vector.load %arg6[%c0_4, %c0_5] : memref<1x256xf32, #tpu.memory_space<vmem>>, vector<1x256xf32>
    %7 = vector.broadcast %6 : vector<1x256xf32> to vector<2x256xf32>
    %8 = arith.addf %5, %7 : vector<2x256xf32>
    %cst_6 = arith.constant 0.000000e+00 : f32
    %9 = vector.broadcast %cst_6 : f32 to vector<2x256xf32>
    %10 = arith.maximumf %8, %9 : vector<2x256xf32>
    %c0_7 = arith.constant 0 : index
    %c0_8 = arith.constant 0 : index
    %11 = vector.load %arg9[%c0_7, %c0_8] : memref<2x128xf32, #tpu.memory_space<vmem>>, vector<2x128xf32>
    %12 = arith.truncf %10 : vector<2x256xf32> to vector<2x256xbf16>
    %c0_9 = arith.constant 0 : index
    %c0_10 = arith.constant 0 : index
    %13 = vector.load %arg7[%c0_9, %c0_10] : memref<256x128xbf16, #tpu.memory_space<vmem>>, vector<256x128xbf16>
    %cst_11 = arith.constant dense<0.000000e+00> : vector<2x128xf32>
    %14 = tpu.matmul %12, %13, %cst_11 {dimension_numbers = #tpu.dot_dimension_numbers<[1], [0], [0], [1], [0, 0, 1, 1], [], []>} : vector<2x256xbf16>, vector<256x128xbf16>, vector<2x128xf32> -> vector<2x128xf32>
    %15 = arith.addf %11, %14 : vector<2x128xf32>
    %c0_12 = arith.constant 0 : index
    %c0_13 = arith.constant 0 : index
    %16 = vector.load %arg9[%c0_12, %c0_13] : memref<2x128xf32, #tpu.memory_space<vmem>>, vector<2x128xf32>
    tpu.vector_store %arg9[%c0_12, %c0_13], %15 {strides = array<i32>} : memref<2x128xf32, #tpu.memory_space<vmem>>, vector<2x128xf32>,
    %c3_i32 = arith.constant 3 : i32
    %17 = arith.cmpi eq, %arg0, %c3_i32 : i32
    %18 = arith.extui %17 : i1 to i32
    %c0_i32_14 = arith.constant 0 : i32
    %19 = arith.cmpi ne, %18, %c0_i32_14 : i32
    scf.if %19 {
      %c0_15 = arith.constant 0 : index
      %c0_16 = arith.constant 0 : index
      %20 = vector.load %arg9[%c0_15, %c0_16] : memref<2x128xf32, #tpu.memory_space<vmem>>, vector<2x128xf32>
      %c0_17 = arith.constant 0 : index
      %c0_18 = arith.constant 0 : index
      %21 = vector.load %arg8[%c0_17, %c0_18] : memref<1x128xf32, #tpu.memory_space<vmem>>, vector<1x128xf32>
      %22 = vector.broadcast %21 : vector<1x128xf32> to vector<2x128xf32>
      %23 = arith.addf %20, %22 : vector<2x128xf32>
      %c0_19 = arith.constant 0 : index
      %c0_20 = arith.constant 0 : index
      %24 = vector.load %arg9[%c0_19, %c0_20] : memref<2x128xf32, #tpu.memory_space<vmem>>, vector<2x128xf32>
      tpu.vector_store %arg9[%c0_19, %c0_20], %23 {strides = array<i32>} : memref<2x128xf32, #tpu.memory_space<vmem>>, vector<2x128xf32>,
    } else {
    }
    return
  }
  func.func @transform_0(%arg0: i32) -> (i32, i32) {
    %c0_i32 = arith.constant 0 : i32
    %c0_i32_0 = arith.constant 0 : i32
    %c0_i32_1 = arith.constant 0 : i32
    return %c0_i32, %c0_i32_0 : i32, i32
  }
  func.func @transform_1(%arg0: i32) -> (i32, i32) {
    %c0_i32 = arith.constant 0 : i32
    %c0_i32_0 = arith.constant 0 : i32
    %c0_i32_1 = arith.constant 0 : i32
    return %c0_i32, %c0_i32_0 : i32, i32
  }
  func.func @transform_2(%arg0: i32) -> (i32, i32) {
    %c0_i32 = arith.constant 0 : i32
    %c0_i32_0 = arith.constant 0 : i32
    %c0_i32_1 = arith.constant 0 : i32
    return %c0_i32, %c0_i32_0 : i32, i32
  }
  func.func @transform_3(%arg0: i32) -> (i32, i32) {
    %c0_i32 = arith.constant 0 : i32
    %c0_i32_0 = arith.constant 0 : i32
    %c0_i32_1 = arith.constant 0 : i32
    return %c0_i32, %c0_i32_0 : i32, i32
  }
  func.func @transform_4(%arg0: i32) -> (i32, i32) {
    %c0_i32 = arith.constant 0 : i32
    %c0_i32_0 = arith.constant 0 : i32
    return %c0_i32, %arg0 : i32, i32
  }
  func.func @transform_5(%arg0: i32) -> (i32, i32) {
    %c0_i32 = arith.constant 0 : i32
    %c0_i32_0 = arith.constant 0 : i32
    return %c0_i32, %arg0 : i32, i32
  }
  func.func @transform_6(%arg0: i32) -> (i32, i32) {
    %c0_i32 = arith.constant 0 : i32
    %c0_i32_0 = arith.constant 0 : i32
    return %arg0, %c0_i32 : i32, i32
  }
  func.func @transform_7(%arg0: i32) -> (i32, i32) {
    %c0_i32 = arith.constant 0 : i32
    %c0_i32_0 = arith.constant 0 : i32
    %c0_i32_1 = arith.constant 0 : i32
    return %c0_i32, %c0_i32_0 : i32, i32
  }
  func.func @transform_8(%arg0: i32) -> (i32, i32) {
    %c0_i32 = arith.constant 0 : i32
    %c0_i32_0 = arith.constant 0 : i32
    %c0_i32_1 = arith.constant 0 : i32
    return %c0_i32, %c0_i32_0 : i32, i32
  }
}

</mosaic_0001>

<llo_original>
// kernel: tpu_custom_call.1
$region0: #{tpu_custom_call.1}
  #allocation0 [shape = 'u32[]', space=smem, size = 0x4, offset = 0x4, fixed_abs, tag = 'smem constant byte address 0x4 - core index']
  #allocation1 [shape = 'u32[144,128]{1,0:T(1,128)}', space=vmem, size = 0x12000, scoped, tag = 'internal scratch']
  #allocation2 [shape = 'bf16[2,2048]{1,0:T(2,128)(2,1)}', space=vmem, size = 0x2000, scoped, tag = 'scratch operand']
  %s0 = inlined_call_operand.vmem [shape: f32[392,16], index: 0, kind: input, shape index: {}]
  %s1 = inlined_call_operand.hbm [shape: f32[32,392], index: 1, kind: input, shape index: {}]
  %s2 = inlined_call_operand.hbm [shape: f32[16,128], index: 2, kind: input, shape index: {}]
  %s3 = inlined_call_operand.hbm [shape: f32[1,128], index: 3, kind: input, shape index: {}]
  %s4 = inlined_call_operand.hbm [shape: bf16[2048,1024], index: 4, kind: input, shape index: {}]
  %s5 = inlined_call_operand.hbm [shape: f32[1,1024], index: 5, kind: input, shape index: {}]
  %s6 = inlined_call_operand.hbm [shape: bf16[1024,128], index: 6, kind: input, shape index: {}]
  %s7 = inlined_call_operand.hbm [shape: f32[1,128], index: 7, kind: input, shape index: {}]
  %s8 = inlined_call_operand.hbm [shape: f32[2,128], index: 8, kind: output, shape index: {}]
  %s9 = sld [smem:[#allocation0]]
  $region101: #{tpu_custom_call.1} parent=0
    _
  %s11 = ssub.s32 1, %s9
  %s12 = scalar_select 0, %s11, %s9
  $region1: #{tpu_custom_call.1} parent=0
    #allocation3 [shape = 'u8[65536]{0}', space=vmem, size = 0x10000, scoped, tag = 'input window, operand 1, single buffered']
    #allocation4 [shape = 's32[2]{0}', space=sflag, size = 0x8, scoped, tag = 'scoped memory for tpu_custom_call.1']
    #allocation5 [shape = 's32[2]{0}', space=sflag, size = 0x8, scoped, tag = 'scoped memory for tpu_custom_call.1']
    #allocation6 [shape = 'u8[8192]{0}', space=vmem, size = 0x2000, scoped, tag = 'input window, operand 2, single buffered']
    #allocation7 [shape = 's32[1]{0}', space=sflag, size = 0x4, scoped, tag = 'scoped memory for tpu_custom_call.1']
    #allocation8 [shape = 'u8[512]{0}', space=vmem, size = 0x400, scoped, tag = 'input window, operand 3, single buffered']
    #allocation9 [shape = 'u8[2097152]{0}', space=vmem, size = 0x200000, scoped, tag = 'input window, operand 4']
    #allocation10 [shape = 's32[2]{0}', space=sflag, size = 0x8, scoped, tag = 'scoped memory for tpu_custom_call.1']
    #allocation11 [shape = 'u8[2048]{0}', space=vmem, size = 0x800, scoped, tag = 'input window, operand 5']
    #allocation12 [shape = 'u8[131072]{0}', space=vmem, size = 0x20000, scoped, tag = 'input window, operand 6']
    #allocation13 [shape = 's32[2]{0}', space=sflag, size = 0x8, scoped, tag = 'scoped memory for tpu_custom_call.1']
    #allocation14 [shape = 'u8[512]{0}', space=vmem, size = 0x400, scoped, tag = 'input window, operand 7, single buffered']
    #allocation15 [shape = 'u8[1024]{0}', space=vmem, size = 0x400, scoped, tag = 'output window, operand 0, single buffered']
    %13 = vsyncpa [#allocation4], 0
    %14 = vsyncpa [#allocation7], 0
    %15 = vsyncpa [#allocation10], 0
    %s16 = scalar_lea.sflag [#allocation10], 1
    %17 = vsyncpa %s16, 0
    %18 = vsyncpa [#allocation13], 0
    %s19 = scalar_lea.sflag [#allocation13], 1
    %20 = vsyncpa %s19, 0
    %21 = vsyncpa [#allocation5], 0
    loop: start=0, step=1, limit=6
    $region2: #{tpu_custom_call.1} parent=1 // loop_pre_header
      _
    $region3: #{tpu_custom_call.1} parent=1 // loop_header
      %s23 = sphi 0, %s27
      %p24 = scmp.ge.s32.totalorder %s23, 6
      %s31 = sphi 0, %s31
      %s33 = sphi 0, %s31
      %s34 = sphi 0, %s33
      %s48 = sphi 0, %s34
      %s52 = sphi 0, %s52
      %s54 = sphi 0, %s52
      %s55 = sphi 0, %s54
      %s69 = sphi 0, %s55
      %s73 = sphi 0, %s73
      %s75 = sphi 0, %s73
      %s76 = sphi 0, %s75
      %s90 = sphi 0, %s76
      %s94 = sphi 0, %s94
      %s96 = sphi 0, %s94
      %s97 = sphi 0, %s96
      %s111 = sphi 0, %s97
      %s117 = sphi 0, %s119
      %s120 = sphi 0, %s117
      %s121 = sphi 0, %s120
      %s137 = sphi 0, %s121
      %s143 = sphi 0, %s145
      %s146 = sphi 0, %s143
      %s147 = sphi 0, %s146
      %s163 = sphi 0, %s147
      %s169 = sphi 0, %s171
      %s172 = sphi 0, %s169
      %s173 = sphi 0, %s172
      %s189 = sphi 0, %s173
      %s193 = sphi 0, %s193
      %s195 = sphi 0, %s193
      %s196 = sphi 0, %s195
      %s210 = sphi 0, %s196
      %s214 = sphi 0, %s214
      %s216 = sphi 0, %s214
      %s217 = sphi 0, %s216
      %s231 = sphi 0, %s217
    $region4: #{tpu_custom_call.1} parent=1 // loop_header_branch
      %26 = sbr.rel (%p24) target = $region8
    $region5: #{tpu_custom_call.1} parent=1 // loop_body
      %s28 = ssub.s32 %s23, 1
      %s29 = ssub.s32 %s23, 2
      %s30 = sadd.s32 %s23, 1
      %s32 = sadd.s32 %s31, 1
      %p35 = scmp.eq.s32.totalorder %s23, 3
      %p36 = scmp.ne.s32.totalorder %s31, %s33
      %p37 = scmp.eq.s32.totalorder %s23, 0
      %p38 = por %p36, %p37
      %p39 = scmp.ne.s32.totalorder %s31, %s33
      %p40 = scmp.eq.s32.totalorder %s28, 3
      %p41 = por %p39, %p40
      %p42 = scmp.ne.s32.totalorder %s33, %s34
      %p43 = scmp.eq.s32.totalorder %s28, 0
      %p44 = por %p42, %p43
      %p45 = scmp.ne.s32.totalorder %s33, %s34
      %p46 = scmp.eq.s32.totalorder %s29, 3
      %p47 = por %p45, %p46
      %p49 = scmp.ne.s32.totalorder %s34, %s48
      %p50 = scmp.eq.s32.totalorder %s29, 0
      %p51 = por %p49, %p50
      %s53 = sadd.s32 %s52, 1
      %p56 = scmp.eq.s32.totalorder %s23, 3
      %p57 = scmp.ne.s32.totalorder %s52, %s54
      %p58 = scmp.eq.s32.totalorder %s23, 0
      %p59 = por %p57, %p58
      %p60 = scmp.ne.s32.totalorder %s52, %s54
      %p61 = scmp.eq.s32.totalorder %s28, 3
      %p62 = por %p60, %p61
      %p63 = scmp.ne.s32.totalorder %s54, %s55
      %p64 = scmp.eq.s32.totalorder %s28, 0
      %p65 = por %p63, %p64
      %p66 = scmp.ne.s32.totalorder %s54, %s55
      %p67 = scmp.eq.s32.totalorder %s29, 3
      %p68 = por %p66, %p67
      %p70 = scmp.ne.s32.totalorder %s55, %s69
      %p71 = scmp.eq.s32.totalorder %s29, 0
      %p72 = por %p70, %p71
      %s74 = sadd.s32 %s73, 1
      %p77 = scmp.eq.s32.totalorder %s23, 3
      %p78 = scmp.ne.s32.totalorder %s73, %s75
      %p79 = scmp.eq.s32.totalorder %s23, 0
      %p80 = por %p78, %p79
      %p81 = scmp.ne.s32.totalorder %s73, %s75
      %p82 = scmp.eq.s32.totalorder %s28, 3
      %p83 = por %p81, %p82
      %p84 = scmp.ne.s32.totalorder %s75, %s76
      %p85 = scmp.eq.s32.totalorder %s28, 0
      %p86 = por %p84, %p85
      %p87 = scmp.ne.s32.totalorder %s75, %s76
      %p88 = scmp.eq.s32.totalorder %s29, 3
      %p89 = por %p87, %p88
      %p91 = scmp.ne.s32.totalorder %s76, %s90
      %p92 = scmp.eq.s32.totalorder %s29, 0
      %p93 = por %p91, %p92
      %s95 = sadd.s32 %s94, 1
      %p98 = scmp.eq.s32.totalorder %s23, 3
      %p99 = scmp.ne.s32.totalorder %s94, %s96
      %p100 = scmp.eq.s32.totalorder %s23, 0
      %p101 = por %p99, %p100
      %p102 = scmp.ne.s32.totalorder %s94, %s96
      %p103 = scmp.eq.s32.totalorder %s28, 3
      %p104 = por %p102, %p103
      %p105 = scmp.ne.s32.totalorder %s96, %s97
      %p106 = scmp.eq.s32.totalorder %s28, 0
      %p107 = por %p105, %p106
      %p108 = scmp.ne.s32.totalorder %s96, %s97
      %p109 = scmp.eq.s32.totalorder %s29, 3
      %p110 = por %p108, %p109
      %p112 = scmp.ne.s32.totalorder %s97, %s111
      %p113 = scmp.eq.s32.totalorder %s29, 0
      %p114 = por %p112, %p113
      %s115 = ssub.s32 %s23, %s30
      %p116 = scmp.eq.s32.totalorder %s115, 0
      %s118 = sadd.s32 %s117, 1
      %s119 = scalar_select %p116, %s117, %s118
      %p122 = pneg %p116
      %p123 = scmp.eq.s32.totalorder %s23, 3
      %p124 = por %p122, %p123
      %p125 = scmp.ne.s32.totalorder %s117, %s120
      %p126 = scmp.eq.s32.totalorder %s23, 0
      %p127 = por %p125, %p126
      %p128 = scmp.ne.s32.totalorder %s117, %s120
      %p129 = scmp.eq.s32.totalorder %s28, 3
      %p130 = por %p128, %p129
      %p131 = scmp.ne.s32.totalorder %s120, %s121
      %p132 = scmp.eq.s32.totalorder %s28, 0
      %p133 = por %p131, %p132
      %p134 = scmp.ne.s32.totalorder %s120, %s121
      %p135 = scmp.eq.s32.totalorder %s29, 3
      %p136 = por %p134, %p135
      %p138 = scmp.ne.s32.totalorder %s121, %s137
      %p139 = scmp.eq.s32.totalorder %s29, 0
      %p140 = por %p138, %p139
      %s141 = ssub.s32 %s23, %s30
      %p142 = scmp.eq.s32.totalorder %s141, 0
      %s144 = sadd.s32 %s143, 1
      %s145 = scalar_select %p142, %s143, %s144
      %p148 = pneg %p142
      %p149 = scmp.eq.s32.totalorder %s23, 3
      %p150 = por %p148, %p149
      %p151 = scmp.ne.s32.totalorder %s143, %s146
      %p152 = scmp.eq.s32.totalorder %s23, 0
      %p153 = por %p151, %p152
      %p154 = scmp.ne.s32.totalorder %s143, %s146
      %p155 = scmp.eq.s32.totalorder %s28, 3
      %p156 = por %p154, %p155
      %p157 = scmp.ne.s32.totalorder %s146, %s147
      %p158 = scmp.eq.s32.totalorder %s28, 0
      %p159 = por %p157, %p158
      %p160 = scmp.ne.s32.totalorder %s146, %s147
      %p161 = scmp.eq.s32.totalorder %s29, 3
      %p162 = por %p160, %p161
      %p164 = scmp.ne.s32.totalorder %s147, %s163
      %p165 = scmp.eq.s32.totalorder %s29, 0
      %p166 = por %p164, %p165
      %s167 = ssub.s32 %s23, %s30
      %p168 = scmp.eq.s32.totalorder %s167, 0
      %s170 = sadd.s32 %s169, 1
      %s171 = scalar_select %p168, %s169, %s170
      %p174 = pneg %p168
      %p175 = scmp.eq.s32.totalorder %s23, 3
      %p176 = por %p174, %p175
      %p177 = scmp.ne.s32.totalorder %s169, %s172
      %p178 = scmp.eq.s32.totalorder %s23, 0
      %p179 = por %p177, %p178
      %p180 = scmp.ne.s32.totalorder %s169, %s172
      %p181 = scmp.eq.s32.totalorder %s28, 3
      %p182 = por %p180, %p181
      %p183 = scmp.ne.s32.totalorder %s172, %s173
      %p184 = scmp.eq.s32.totalorder %s28, 0
      %p185 = por %p183, %p184
      %p186 = scmp.ne.s32.totalorder %s172, %s173
      %p187 = scmp.eq.s32.totalorder %s29, 3
      %p188 = por %p186, %p187
      %p190 = scmp.ne.s32.totalorder %s173, %s189
      %p191 = scmp.eq.s32.totalorder %s29, 0
      %p192 = por %p190, %p191
      %s194 = sadd.s32 %s193, 1
      %p197 = scmp.eq.s32.totalorder %s23, 3
      %p198 = scmp.ne.s32.totalorder %s193, %s195
      %p199 = scmp.eq.s32.totalorder %s23, 0
      %p200 = por %p198, %p199
      %p201 = scmp.ne.s32.totalorder %s193, %s195
      %p202 = scmp.eq.s32.totalorder %s28, 3
      %p203 = por %p201, %p202
      %p204 = scmp.ne.s32.totalorder %s195, %s196
      %p205 = scmp.eq.s32.totalorder %s28, 0
      %p206 = por %p204, %p205
      %p207 = scmp.ne.s32.totalorder %s195, %s196
      %p208 = scmp.eq.s32.totalorder %s29, 3
      %p209 = por %p207, %p208
      %p211 = scmp.ne.s32.totalorder %s196, %s210
      %p212 = scmp.eq.s32.totalorder %s29, 0
      %p213 = por %p211, %p212
      %s215 = sadd.s32 %s214, 1
      %p218 = scmp.eq.s32.totalorder %s23, 3
      %p219 = scmp.ne.s32.totalorder %s214, %s216
      %p220 = scmp.eq.s32.totalorder %s23, 0
      %p221 = por %p219, %p220
      %p222 = scmp.ne.s32.totalorder %s214, %s216
      %p223 = scmp.eq.s32.totalorder %s28, 3
      %p224 = por %p222, %p223
      %p225 = scmp.ne.s32.totalorder %s216, %s217
      %p226 = scmp.eq.s32.totalorder %s28, 0
      %p227 = por %p225, %p226
      %p228 = scmp.ne.s32.totalorder %s216, %s217
      %p229 = scmp.eq.s32.totalorder %s29, 3
      %p230 = por %p228, %p229
      %p232 = scmp.ne.s32.totalorder %s217, %s231
      %p233 = scmp.eq.s32.totalorder %s29, 0
      %p234 = por %p232, %p233
      %p235 = scmp.le.s32.totalorder 1, %s23
      %p236 = scmp.lt.s32.totalorder %s23, 5
      %p237 = pnand %p235, %p236
      %p238 = pneg %p237
      // Predicated region
      $region9: #{tpu_custom_call.1} parent=5 // pred_check
        _
      $region10: #{tpu_custom_call.1} parent=5 // pred_check_branch
        %240 = sbr.rel (%p237) target = $region12
      $region11: #{tpu_custom_call.1} parent=5 // pred_region
        %s241 = ssub.s32 %s23, 1
        // Predicated region
        $region13: #{tpu_custom_call.1} parent=11 // pred_check
          %p242 = pneg %p44
        $region14: #{tpu_custom_call.1} parent=11 // pred_check_branch
          %244 = sbr.rel (%p242) target = $region16
        $region15: #{tpu_custom_call.1} parent=11 // pred_region
          _
        $region16: #{tpu_custom_call.1} parent=11 // pred_fallthru
          _
        // Predicated region
        $region17: #{tpu_custom_call.1} parent=11 // pred_check
          %p245 = pneg %p65
        $region18: #{tpu_custom_call.1} parent=11 // pred_check_branch
          %247 = sbr.rel (%p245) target = $region20
        $region19: #{tpu_custom_call.1} parent=11 // pred_region
          %s249 = ssub.s32 2048, 2048
          %250 = vsyncadd [#allocation4], %s249
          %s251 = sshll.u32 [#allocation3], 4
          %s252 = int_to_ptr.vmem [resolvable:$true] %s251
          %257 = dma.hbm_to_vmem [thread:$0]  %s1, 2048, %s252, [#allocation4], 512, 512, 32
        $region20: #{tpu_custom_call.1} parent=11 // pred_fallthru
          _
        // Predicated region
        $region21: #{tpu_custom_call.1} parent=11 // pred_check
          %p258 = pneg %p86
        $region22: #{tpu_custom_call.1} parent=11 // pred_check_branch
          %260 = sbr.rel (%p258) target = $region24
        $region23: #{tpu_custom_call.1} parent=11 // pred_region
          %s262 = ssub.s32 256, 256
          %263 = vsyncadd [#allocation7], %s262
          %s264 = sshll.u32 [#allocation6], 4
          %s265 = int_to_ptr.vmem [resolvable:$true] %s264
          %270 = dma.hbm_to_vmem [thread:$0]  %s2, 256, %s265, [#allocation7], 128, 128, 8
        $region24: #{tpu_custom_call.1} parent=11 // pred_fallthru
          _
        // Predicated region
        $region25: #{tpu_custom_call.1} parent=11 // pred_check
          %p271 = pneg %p107
        $region26: #{tpu_custom_call.1} parent=11 // pred_check_branch
          %273 = sbr.rel (%p271) target = $region28
        $region27: #{tpu_custom_call.1} parent=11 // pred_region
          %s275 = ssub.s32 16, 16
          %276 = vsyncadd [#allocation7], %s275
          %s278 = sshll.u32 [#allocation8], 4
          %s279 = int_to_ptr.vmem [resolvable:$true] %s278
          %281 = dma.hbm_to_vmem [thread:$0]  %s3, 16, %s279, [#allocation7]
        $region28: #{tpu_custom_call.1} parent=11 // pred_fallthru
          _
        // Predicated region
        $region29: #{tpu_custom_call.1} parent=11 // pred_check
          %p282 = pneg %p206
        $region30: #{tpu_custom_call.1} parent=11 // pred_check_branch
          %284 = sbr.rel (%p282) target = $region32
        $region31: #{tpu_custom_call.1} parent=11 // pred_region
          %s286 = ssub.s32 16, 16
          %287 = vsyncadd [#allocation13], %s286
          %s289 = sshll.u32 [#allocation14], 4
          %s290 = int_to_ptr.vmem [resolvable:$true] %s289
          %292 = dma.hbm_to_vmem [thread:$0]  %s7, 16, %s290, [#allocation13]
        $region32: #{tpu_custom_call.1} parent=11 // pred_fallthru
          _
      $region12: #{tpu_custom_call.1} parent=5 // pred_fallthru
        _
      %p293 = scmp.lt.s32.totalorder %s23, 4
      // Predicated region
      $region33: #{tpu_custom_call.1} parent=5 // pred_check
        %p294 = pneg %p293
      $region34: #{tpu_custom_call.1} parent=5 // pred_check_branch
        %296 = sbr.rel (%p294) target = $region36
      $region35: #{tpu_custom_call.1} parent=5 // pred_region
        // Predicated region
        $region37: #{tpu_custom_call.1} parent=35 // pred_check
          %p297 = pneg %p127
        $region38: #{tpu_custom_call.1} parent=35 // pred_check_branch
          %299 = sbr.rel (%p297) target = $region40
        $region39: #{tpu_custom_call.1} parent=35 // pred_region
          %s300 = sand.u32 %s23, 1
          %s301 = scalar_lea.sflag [#allocation10], %s300
          %s302 = sand.u32 %s117, 1
          %s303 = smul.addr %s302, 2048
          %s304 = scalar_lea.vmem [#allocation9], %s303
          %s305 = smul.u32 2, %s23
          %s307 = ssub.s32 32768, 32768
          %308 = vsyncadd %s301, %s307
          %s309 = smul.addr %s305, 64
          %s310 = scalar_lea.hbm %s4, %s309
          %s311 = sshll.u32 %s304, 4
          %s312 = int_to_ptr.vmem [resolvable:$true] %s311
          %317 = dma.hbm_to_vmem [thread:$0]  %s310, 32768, %s312, %s301, 512, 128, 8
        $region40: #{tpu_custom_call.1} parent=35 // pred_fallthru
          _
        // Predicated region
        $region41: #{tpu_custom_call.1} parent=35 // pred_check
          %p318 = pneg %p153
        $region42: #{tpu_custom_call.1} parent=35 // pred_check_branch
          %320 = sbr.rel (%p318) target = $region44
        $region43: #{tpu_custom_call.1} parent=35 // pred_region
          %s321 = sand.u32 %s23, 1
          %s322 = scalar_lea.sflag [#allocation10], %s321
          %s323 = sand.u32 %s143, 1
          %s324 = smul.addr %s323, 2
          %s325 = scalar_lea.vmem [#allocation11], %s324
          %s326 = smul.u32 2, %s23
          %s328 = ssub.s32 32, 32
          %329 = vsyncadd %s322, %s328
          %s330 = smul.addr %s326, 16
          %s331 = scalar_lea.hbm %s5, %s330
          %s333 = sshll.u32 %s325, 4
          %s334 = int_to_ptr.vmem [resolvable:$true] %s333
          %336 = dma.hbm_to_vmem [thread:$0]  %s331, 32, %s334, %s322
        $region44: #{tpu_custom_call.1} parent=35 // pred_fallthru
          _
        // Predicated region
        $region45: #{tpu_custom_call.1} parent=35 // pred_check
          %p337 = pneg %p179
        $region46: #{tpu_custom_call.1} parent=35 // pred_check_branch
          %339 = sbr.rel (%p337) target = $region48
        $region47: #{tpu_custom_call.1} parent=35 // pred_region
          %s340 = sand.u32 %s23, 1
          %s341 = scalar_lea.sflag [#allocation13], %s340
          %s342 = sand.u32 %s169, 1
          %s343 = smul.addr %s342, 128
          %s344 = scalar_lea.vmem [#allocation12], %s343
          %s345 = smul.u32 32, %s23
          %s347 = ssub.s32 2048, 2048
          %348 = vsyncadd %s341, %s347
          %s349 = smul.addr %s345, 64
          %s350 = scalar_lea.hbm %s6, %s349
          %s351 = sshll.u32 %s344, 4
          %s352 = int_to_ptr.vmem [resolvable:$true] %s351
          %357 = dma.hbm_to_vmem [thread:$0]  %s350, 2048, %s352, %s341, 64, 64, 4
        $region48: #{tpu_custom_call.1} parent=35 // pred_fallthru
          _
      $region36: #{tpu_custom_call.1} parent=5 // pred_fallthru
        _
      %p358 = scmp.le.s32.totalorder 1, %s23
      %p359 = scmp.lt.s32.totalorder %s23, 5
      %p360 = pnand %p358, %p359
      %p361 = pneg %p360
      // Predicated region
      $region49: #{tpu_custom_call.1} parent=5 // pred_check
        _
      $region50: #{tpu_custom_call.1} parent=5 // pred_check_branch
        %363 = sbr.rel (%p360) target = $region52
      $region51: #{tpu_custom_call.1} parent=5 // pred_region
        %s364 = ssub.s32 %s23, 1
        // Predicated region
        $region53: #{tpu_custom_call.1} parent=51 // pred_check
          %p365 = pneg %p65
        $region54: #{tpu_custom_call.1} parent=51 // pred_check_branch
          %367 = sbr.rel (%p365) target = $region56
        $region55: #{tpu_custom_call.1} parent=51 // pred_region
          %368 = dma.done [#allocation4], 2048
        $region56: #{tpu_custom_call.1} parent=51 // pred_fallthru
          _
        // Predicated region
        $region57: #{tpu_custom_call.1} parent=51 // pred_check
          %p369 = pneg %p86
        $region58: #{tpu_custom_call.1} parent=51 // pred_check_branch
          %371 = sbr.rel (%p369) target = $region60
        $region59: #{tpu_custom_call.1} parent=51 // pred_region
          %372 = dma.done [#allocation7], 256
        $region60: #{tpu_custom_call.1} parent=51 // pred_fallthru
          _
        // Predicated region
        $region61: #{tpu_custom_call.1} parent=51 // pred_check
          %p373 = pneg %p107
        $region62: #{tpu_custom_call.1} parent=51 // pred_check_branch
          %375 = sbr.rel (%p373) target = $region64
        $region63: #{tpu_custom_call.1} parent=51 // pred_region
          %376 = dma.done [#allocation7], 16
        $region64: #{tpu_custom_call.1} parent=51 // pred_fallthru
          _
        %s377 = sand.u32 %s28, 1
        %s378 = scalar_lea.sflag [#allocation10], %s377
        %s379 = sand.u32 %s120, 1
        %s380 = smul.addr %s379, 2048
        %s381 = scalar_lea.vmem [#allocation9], %s380
        // Predicated region
        $region65: #{tpu_custom_call.1} parent=51 // pred_check
          %p382 = pneg %p133
        $region66: #{tpu_custom_call.1} parent=51 // pred_check_branch
          %384 = sbr.rel (%p382) target = $region68
        $region67: #{tpu_custom_call.1} parent=51 // pred_region
          %385 = dma.done %s378, 32768
        $region68: #{tpu_custom_call.1} parent=51 // pred_fallthru
          _
        %s386 = sand.u32 %s28, 1
        %s387 = scalar_lea.sflag [#allocation10], %s386
        %s388 = sand.u32 %s146, 1
        %s389 = smul.addr %s388, 2
        %s390 = scalar_lea.vmem [#allocation11], %s389
        // Predicated region
        $region69: #{tpu_custom_call.1} parent=51 // pred_check
          %p391 = pneg %p159
        $region70: #{tpu_custom_call.1} parent=51 // pred_check_branch
          %393 = sbr.rel (%p391) target = $region72
        $region71: #{tpu_custom_call.1} parent=51 // pred_region
          %394 = dma.done %s387, 32
        $region72: #{tpu_custom_call.1} parent=51 // pred_fallthru
          _
        %s395 = sand.u32 %s28, 1
        %s396 = scalar_lea.sflag [#allocation13], %s395
        %s397 = sand.u32 %s172, 1
        %s398 = smul.addr %s397, 128
        %s399 = scalar_lea.vmem [#allocation12], %s398
        // Predicated region
        $region73: #{tpu_custom_call.1} parent=51 // pred_check
          %p400 = pneg %p185
        $region74: #{tpu_custom_call.1} parent=51 // pred_check_branch
          %402 = sbr.rel (%p400) target = $region76
        $region75: #{tpu_custom_call.1} parent=51 // pred_region
          %403 = dma.done %s396, 2048
        $region76: #{tpu_custom_call.1} parent=51 // pred_fallthru
          _
        // Predicated region
        $region77: #{tpu_custom_call.1} parent=51 // pred_check
          %p404 = pneg %p206
        $region78: #{tpu_custom_call.1} parent=51 // pred_check_branch
          %406 = sbr.rel (%p404) target = $region80
        $region79: #{tpu_custom_call.1} parent=51 // pred_region
          %407 = dma.done [#allocation13], 16
        $region80: #{tpu_custom_call.1} parent=51 // pred_fallthru
          _
        %p408 = pneg %p44
        %p409 = pneg %p41
        %p410 = pneg %p65
        %p411 = pneg %p62
        %p412 = pneg %p86
        %p413 = pneg %p83
        %p414 = pneg %p107
        %p415 = pneg %p104
        %s416 = sand.u32 %s28, 1
        %s417 = scalar_lea.sflag [#allocation10], %s416
        %s418 = sand.u32 %s120, 1
        %s419 = smul.addr %s418, 2048
        %s420 = scalar_lea.vmem [#allocation9], %s419
        %p421 = pneg %p133
        %p422 = pneg %p130
        %s423 = sand.u32 %s28, 1
        %s424 = scalar_lea.sflag [#allocation10], %s423
        %s425 = sand.u32 %s146, 1
        %s426 = smul.addr %s425, 2
        %s427 = scalar_lea.vmem [#allocation11], %s426
        %p428 = pneg %p159
        %p429 = pneg %p156
        %s430 = sand.u32 %s28, 1
        %s431 = scalar_lea.sflag [#allocation13], %s430
        %s432 = sand.u32 %s172, 1
        %s433 = smul.addr %s432, 128
        %s434 = scalar_lea.vmem [#allocation12], %s433
        %p435 = pneg %p185
        %p436 = pneg %p182
        %p437 = pneg %p206
        %p438 = pneg %p203
        %p439 = pneg %p227
        %p440 = pneg %p224
        %s441 = smul.u32 2, %s28
        %s442 = smul.u32 2, %s28
        %s443 = smul.u32 32, %s28
        %p445 = scmp.eq.s32.totalorder %s28, 0
        // Predicated region
        $region81: #{tpu_custom_call.1} parent=51 // pred_check
          %p446 = pneg %p445
        $region82: #{tpu_custom_call.1} parent=51 // pred_check_branch
          %448 = sbr.rel (%p446) target = $region84
        $region83: #{tpu_custom_call.1} parent=51 // pred_region
          %v449 = vld [vmem:[#allocation3] sm:$0xff]
          %v450 = vld [vmem:[#allocation3 + $0x8] sm:$0xff]
          %v451 = vld [vmem:[#allocation3 + $0x10] sm:$0xff]
          %v452 = vld [vmem:[#allocation3 + $0x18] sm:$0xff]
          %v453 = vld [vmem:[#allocation3 + $0x20] sm:$0xff]
          %v454 = vld [vmem:[#allocation3 + $0x28] sm:$0xff]
          %v455 = vld [vmem:[#allocation3 + $0x30] sm:$0xff]
          %v456 = vld [vmem:[#allocation3 + $0x38] sm:$0xff]
          %v457 = vld [vmem:[#allocation3 + $0x40] sm:$0xff]
          %v458 = vld [vmem:[#allocation3 + $0x48] sm:$0xff]
          %v459 = vld [vmem:[#allocation3 + $0x50] sm:$0xff]
          %v460 = vld [vmem:[#allocation3 + $0x58] sm:$0xff]
          %v461 = vld [vmem:[#allocation3 + $0x60] sm:$0xff]
          %v462 = vld [vmem:[#allocation3 + $0x68] sm:$0xff]
          %v463 = vld [vmem:[#allocation3 + $0x70] sm:$0xff]
          %v464 = vld [vmem:[#allocation3 + $0x78] sm:$0xff]
          %v465 = vld [vmem:[%s0] sm:$0xff]
          %v466 = vld [vmem:[%s0 + $0x8] sm:$0xff]
          %v467 = vld [vmem:[%s0 + $0x10] sm:$0xff]
          %v468 = vld [vmem:[%s0 + $0x18] sm:$0xff]
          %v469 = vld [vmem:[%s0 + $0x20] sm:$0xff]
          %v470 = vld [vmem:[%s0 + $0x28] sm:$0xff]
          %v471 = vld [vmem:[%s0 + $0x30] sm:$0xff]
          %v472 = vld [vmem:[%s0 + $0x38] sm:$0xff]
          %v473 = vld [vmem:[%s0 + $0x40] sm:$0xff]
          %v474 = vld [vmem:[%s0 + $0x48] sm:$0xff]
          %v475 = vld [vmem:[%s0 + $0x50] sm:$0xff]
          %v476 = vld [vmem:[%s0 + $0x58] sm:$0xff]
          %v477 = vld [vmem:[%s0 + $0x60] sm:$0xff]
          %v478 = vld [vmem:[%s0 + $0x68] sm:$0xff]
          %v479 = vld [vmem:[%s0 + $0x70] sm:$0xff]
          %v480 = vld [vmem:[%s0 + $0x78] sm:$0xff]
          %v481 = vld [vmem:[%s0 + $0x80] sm:$0xff]
          %v482 = vld [vmem:[%s0 + $0x88] sm:$0xff]
          %v483 = vld [vmem:[%s0 + $0x90] sm:$0xff]
          %v484 = vld [vmem:[%s0 + $0x98] sm:$0xff]
          %v485 = vld [vmem:[%s0 + $0xa0] sm:$0xff]
          %v486 = vld [vmem:[%s0 + $0xa8] sm:$0xff]
          %v487 = vld [vmem:[%s0 + $0xb0] sm:$0xff]
          %v488 = vld [vmem:[%s0 + $0xb8] sm:$0xff]
          %v489 = vld [vmem:[%s0 + $0xc0] sm:$0xff]
          %v490 = vld [vmem:[%s0 + $0xc8] sm:$0xff]
          %v491 = vld [vmem:[%s0 + $0xd0] sm:$0xff]
          %v492 = vld [vmem:[%s0 + $0xd8] sm:$0xff]
          %v493 = vld [vmem:[%s0 + $0xe0] sm:$0xff]
          %v494 = vld [vmem:[%s0 + $0xe8] sm:$0xff]
          %v495 = vld [vmem:[%s0 + $0xf0] sm:$0xff]
          %v496 = vld [vmem:[%s0 + $0xf8] sm:$0xff]
          %v497 = vld [vmem:[%s0 + $0x100] sm:$0xff]
          %v498 = vld [vmem:[%s0 + $0x108] sm:$0xff]
          %v499 = vld [vmem:[%s0 + $0x110] sm:$0xff]
          %v500 = vld [vmem:[%s0 + $0x118] sm:$0xff]
          %v501 = vld [vmem:[%s0 + $0x120] sm:$0xff]
          %v502 = vld [vmem:[%s0 + $0x128] sm:$0xff]
          %v503 = vld [vmem:[%s0 + $0x130] sm:$0xff]
          %v504 = vld [vmem:[%s0 + $0x138] sm:$0xff]
          %v505 = vld [vmem:[%s0 + $0x140] sm:$0xff]
          %v506 = vld [vmem:[%s0 + $0x148] sm:$0xff]
          %v507 = vld [vmem:[%s0 + $0x150] sm:$0xff]
          %v508 = vld [vmem:[%s0 + $0x158] sm:$0xff]
          %v509 = vld [vmem:[%s0 + $0x160] sm:$0xff]
          %v510 = vld [vmem:[%s0 + $0x168] sm:$0xff]
          %v511 = vld [vmem:[%s0 + $0x170] sm:$0xff]
          %v512 = vld [vmem:[%s0 + $0x178] sm:$0xff]
          %v513 = vld [vmem:[%s0 + $0x180] sm:$0xff]
          %vm514 = vcmask 64512
          %v516 = vsel %vm514, %v452, 0
          %v519 = vsel %vm514, %v456, 0
          %v522 = vsel %vm514, %v460, 0
          %v525 = vsel %vm514, %v464, 0
          %527 = vmatprep.subr.mxu0 0.0
          %528 = vmatpush1.msra.mxu0 %v480
          %529 = vmatprep.subr.mxu0 0.0
          %530 = vmatpush1.msra.mxu0 %v479
          %531 = vmatprep.subr.mxu0 0.0
          %532 = vmatpush1.msra.mxu0 %v478
          %533 = vmatprep.subr.mxu0 0.0
          %534 = vmatpush1.msra.mxu0 %v477
          %535 = vmatprep.subr.mxu0 0.0
          %536 = vmatpush1.msra.mxu0 %v476
          %537 = vmatprep.subr.mxu0 0.0
          %538 = vmatpush1.msra.mxu0 %v475
          %539 = vmatprep.subr.mxu0 0.0
          %540 = vmatpush1.msra.mxu0 %v474
          %541 = vmatprep.subr.mxu0 0.0
          %542 = vmatpush1.msra.mxu0 %v473
          %543 = vmatprep.subr.mxu0 0.0
          %544 = vmatpush1.msra.mxu0 %v472
          %545 = vmatprep.subr.mxu0 0.0
          %546 = vmatpush1.msra.mxu0 %v471
          %547 = vmatprep.subr.mxu0 0.0
          %548 = vmatpush1.msra.mxu0 %v470
          %549 = vmatprep.subr.mxu0 0.0
          %550 = vmatpush1.msra.mxu0 %v469
          %551 = vmatprep.subr.mxu0 0.0
          %552 = vmatpush1.msra.mxu0 %v468
          %553 = vmatprep.subr.mxu0 0.0
          %554 = vmatpush1.msra.mxu0 %v467
          %555 = vmatprep.subr.mxu0 0.0
          %556 = vmatpush1.msra.mxu0 %v466
          %557 = vmatprep.subr.mxu0 0.0
          %558 = vmatpush1.msra.mxu0 %v465
          %559 = vmatprep.subr.mxu0 0.0
          %560 = vmatpush2.msra.mxu0 %v496
          %561 = vmatprep.subr.mxu0 0.0
          %562 = vmatpush2.msra.mxu0 %v495
          %563 = vmatprep.subr.mxu0 0.0
          %564 = vmatpush2.msra.mxu0 %v494
          %565 = vmatprep.subr.mxu0 0.0
          %566 = vmatpush2.msra.mxu0 %v493
          %567 = vmatprep.subr.mxu0 0.0
          %568 = vmatpush2.msra.mxu0 %v492
          %569 = vmatprep.subr.mxu0 0.0
          %570 = vmatpush2.msra.mxu0 %v491
          %571 = vmatprep.subr.mxu0 0.0
          %572 = vmatpush2.msra.mxu0 %v490
          %573 = vmatprep.subr.mxu0 0.0
          %574 = vmatpush2.msra.mxu0 %v489
          %575 = vmatprep.subr.mxu0 0.0
          %576 = vmatpush2.msra.mxu0 %v488
          %577 = vmatprep.subr.mxu0 0.0
          %578 = vmatpush2.msra.mxu0 %v487
          %579 = vmatprep.subr.mxu0 0.0
          %580 = vmatpush2.msra.mxu0 %v486
          %581 = vmatprep.subr.mxu0 0.0
          %582 = vmatpush2.msra.mxu0 %v485
          %583 = vmatprep.subr.mxu0 0.0
          %584 = vmatpush2.msra.mxu0 %v484
          %585 = vmatprep.subr.mxu0 0.0
          %586 = vmatpush2.msra.mxu0 %v483
          %587 = vmatprep.subr.mxu0 0.0
          %588 = vmatpush2.msra.mxu0 %v482
          %589 = vmatprep.subr.mxu0 0.0
          %590 = vmatpush2.msra.mxu0 %v481
          %591 = vmatprep.mubr.f32.mxu0 %v450
          %592 = vmatmul.mubr.f32.gmra.mxu0 %v449
          %v593 = vpop.f32.mrf.mxu0
          %v594 = vadd.f32 0.0, %v593
          %v595 = vpop.f32.mrf.mxu0
          %596 = vmatprep.mubr.f32.mxu0 %v454
          %597 = vmatmul.mubr.f32.gmra.mxu0 %v453
          %v598 = vpop.f32.mrf.mxu0
          %v599 = vadd.f32 0.0, %v598
          %v600 = vpop.f32.mrf.mxu0
          %601 = vmatprep.mubr.f32.mxu0 %v458
          %602 = vmatmul.mubr.f32.gmra.mxu0 %v457
          %v603 = vpop.f32.mrf.mxu0
          %v604 = vadd.f32 0.0, %v603
          %v605 = vpop.f32.mrf.mxu0
          %606 = vmatprep.mubr.f32.mxu0 %v462
          %607 = vmatmul.mubr.f32.gmra.mxu0 %v461
          %v608 = vpop.f32.mrf.mxu0
          %v609 = vadd.f32 0.0, %v608
          %v610 = vpop.f32.mrf.mxu0
          %611 = vdwg.mxu0
          %612 = vmatprep.subr.mxu0 0.0
          %613 = vmatpush1.msra.mxu0 %v512
          %614 = vmatprep.subr.mxu0 0.0
          %615 = vmatpush1.msra.mxu0 %v511
          %616 = vmatprep.subr.mxu0 0.0
          %617 = vmatpush1.msra.mxu0 %v510
          %618 = vmatprep.subr.mxu0 0.0
          %619 = vmatpush1.msra.mxu0 %v509
          %620 = vmatprep.subr.mxu0 0.0
          %621 = vmatpush1.msra.mxu0 %v508
          %622 = vmatprep.subr.mxu0 0.0
          %623 = vmatpush1.msra.mxu0 %v507
          %624 = vmatprep.subr.mxu0 0.0
          %625 = vmatpush1.msra.mxu0 %v506
          %626 = vmatprep.subr.mxu0 0.0
          %627 = vmatpush1.msra.mxu0 %v505
          %628 = vmatprep.subr.mxu0 0.0
          %629 = vmatpush1.msra.mxu0 %v504
          %630 = vmatprep.subr.mxu0 0.0
          %631 = vmatpush1.msra.mxu0 %v503
          %632 = vmatprep.subr.mxu0 0.0
          %633 = vmatpush1.msra.mxu0 %v502
          %634 = vmatprep.subr.mxu0 0.0
          %635 = vmatpush1.msra.mxu0 %v501
          %636 = vmatprep.subr.mxu0 0.0
          %637 = vmatpush1.msra.mxu0 %v500
          %638 = vmatprep.subr.mxu0 0.0
          %639 = vmatpush1.msra.mxu0 %v499
          %640 = vmatprep.subr.mxu0 0.0
          %641 = vmatpush1.msra.mxu0 %v498
          %642 = vmatprep.subr.mxu0 0.0
          %643 = vmatpush1.msra.mxu0 %v497
          %644 = vmatprep.subr.mxu0 0.0
          %645 = vmatpush2.msra.mxu0 0.0
          %646 = vmatprep.subr.mxu0 0.0
          %647 = vmatpush2.msra.mxu0 0.0
          %648 = vmatprep.subr.mxu0 0.0
          %649 = vmatpush2.msra.mxu0 0.0
          %650 = vmatprep.subr.mxu0 0.0
          %651 = vmatpush2.msra.mxu0 0.0
          %652 = vmatprep.subr.mxu0 0.0
          %653 = vmatpush2.msra.mxu0 0.0
          %654 = vmatprep.subr.mxu0 0.0
          %655 = vmatpush2.msra.mxu0 0.0
          %656 = vmatprep.subr.mxu0 0.0
          %657 = vmatpush2.msra.mxu0 0.0
          %658 = vmatprep.subr.mxu0 0.0
          %659 = vmatpush2.msra.mxu0 0.0
          %660 = vmatprep.subr.mxu0 0.0
          %661 = vmatpush2.msra.mxu0 0.0
          %662 = vmatprep.subr.mxu0 0.0
          %663 = vmatpush2.msra.mxu0 0.0
          %664 = vmatprep.subr.mxu0 0.0
          %665 = vmatpush2.msra.mxu0 0.0
          %666 = vmatprep.subr.mxu0 0.0
          %667 = vmatpush2.msra.mxu0 0.0
          %668 = vmatprep.subr.mxu0 0.0
          %669 = vmatpush2.msra.mxu0 0.0
          %670 = vmatprep.subr.mxu0 0.0
          %671 = vmatpush2.msra.mxu0 0.0
          %672 = vmatprep.subr.mxu0 0.0
          %673 = vmatpush2.msra.mxu0 0.0
          %674 = vmatprep.subr.mxu0 0.0
          %675 = vmatpush2.msra.mxu0 %v513
          %676 = vmatprep.mubr.f32.mxu0 %v516
          %677 = vmatmul.mubr.f32.gmra.mxu0 %v451
          %v678 = vpop.f32.mrf.mxu0
          %v679 = vadd.f32 %v594, %v678
          %v680 = vpop.f32.mrf.mxu0
          %681 = vmatprep.mubr.f32.mxu0 %v519
          %682 = vmatmul.mubr.f32.gmra.mxu0 %v455
          %v683 = vpop.f32.mrf.mxu0
          %v684 = vadd.f32 %v599, %v683
          %v685 = vpop.f32.mrf.mxu0
          %686 = vmatprep.mubr.f32.mxu0 %v522
          %687 = vmatmul.mubr.f32.gmra.mxu0 %v459
          %v688 = vpop.f32.mrf.mxu0
          %v689 = vadd.f32 %v604, %v688
          %v690 = vpop.f32.mrf.mxu0
          %691 = vmatprep.mubr.f32.mxu0 %v525
          %692 = vmatmul.mubr.f32.gmra.mxu0 %v463
          %v693 = vpop.f32.mrf.mxu0
          %v694 = vadd.f32 %v609, %v693
          %v695 = vpop.f32.mrf.mxu0
          %696 = vdwg.mxu0
          %v697 = vld [vmem:[#allocation6] sm:$0xff]
          %v698 = vld [vmem:[#allocation6 + $0x8] sm:$0xff]
          %v699 = vld [vmem:[#allocation8] sm:$0x1]
          %v701 = vlaneseq
          %v702 = vshrl.u32 %v701, 7
          %v703 = vsub.s32 0, %v702
          %v704 = vrot.slane %v699, %v703
          %vm706 = vcmask 130048
          %v708 = vsel %vm706, %v679, 0
          %v711 = vsel %vm706, %v684, 0
          %v714 = vsel %vm706, %v689, 0
          %v717 = vsel %vm706, %v694, 0
          %719 = vmatprep.subr.mxu0 0.0
          %720 = vmatpush1.msra.mxu0 0.0
          %721 = vmatprep.subr.mxu0 0.0
          %722 = vmatpush1.msra.mxu0 0.0
          %723 = vmatprep.subr.mxu0 0.0
          %724 = vmatpush1.msra.mxu0 0.0
          %725 = vmatprep.subr.mxu0 0.0
          %726 = vmatpush1.msra.mxu0 0.0
          %727 = vmatprep.subr.mxu0 0.0
          %728 = vmatpush1.msra.mxu0 0.0
          %729 = vmatprep.subr.mxu0 0.0
          %730 = vmatpush1.msra.mxu0 0.0
          %731 = vmatprep.subr.mxu0 0.0
          %732 = vmatpush1.msra.mxu0 0.0
          %733 = vmatprep.subr.mxu0 0.0
          %734 = vmatpush1.msra.mxu0 0.0
          %735 = vmatprep.subr.mxu0 0.0
          %736 = vmatpush1.msra.mxu0 0.0
          %737 = vmatprep.subr.mxu0 0.0
          %738 = vmatpush1.msra.mxu0 0.0
          %739 = vmatprep.subr.mxu0 0.0
          %740 = vmatpush1.msra.mxu0 0.0
          %741 = vmatprep.subr.mxu0 0.0
          %742 = vmatpush1.msra.mxu0 0.0
          %743 = vmatprep.subr.mxu0 0.0
          %744 = vmatpush1.msra.mxu0 0.0
          %745 = vmatprep.subr.mxu0 0.0
          %746 = vmatpush1.msra.mxu0 0.0
          %747 = vmatprep.subr.mxu0 0.0
          %748 = vmatpush1.msra.mxu0 %v698
          %749 = vmatprep.subr.mxu0 0.0
          %750 = vmatpush1.msra.mxu0 %v697
          %751 = vmatprep.subr.mxu0 0.0
          %752 = vmatpush2.msra.mxu0 0.0
          %753 = vmatprep.subr.mxu0 0.0
          %754 = vmatpush2.msra.mxu0 0.0
          %755 = vmatprep.subr.mxu0 0.0
          %756 = vmatpush2.msra.mxu0 0.0
          %757 = vmatprep.subr.mxu0 0.0
          %758 = vmatpush2.msra.mxu0 0.0
          %759 = vmatprep.subr.mxu0 0.0
          %760 = vmatpush2.msra.mxu0 0.0
          %761 = vmatprep.subr.mxu0 0.0
          %762 = vmatpush2.msra.mxu0 0.0
          %763 = vmatprep.subr.mxu0 0.0
          %764 = vmatpush2.msra.mxu0 0.0
          %765 = vmatprep.subr.mxu0 0.0
          %766 = vmatpush2.msra.mxu0 0.0
          %767 = vmatprep.subr.mxu0 0.0
          %768 = vmatpush2.msra.mxu0 0.0
          %769 = vmatprep.subr.mxu0 0.0
          %770 = vmatpush2.msra.mxu0 0.0
          %771 = vmatprep.subr.mxu0 0.0
          %772 = vmatpush2.msra.mxu0 0.0
          %773 = vmatprep.subr.mxu0 0.0
          %774 = vmatpush2.msra.mxu0 0.0
          %775 = vmatprep.subr.mxu0 0.0
          %776 = vmatpush2.msra.mxu0 0.0
          %777 = vmatprep.subr.mxu0 0.0
          %778 = vmatpush2.msra.mxu0 0.0
          %779 = vmatprep.subr.mxu0 0.0
          %780 = vmatpush2.msra.mxu0 0.0
          %781 = vmatprep.subr.mxu0 0.0
          %782 = vmatpush2.msra.mxu0 0.0
          %783 = vmatprep.mubr.f32.mxu0 0.0
          %784 = vmatmul.mubr.f32.gmra.mxu0 %v708
          %v785 = vpop.f32.mrf.mxu0
          %v786 = vadd.f32 %v704, %v785
          %v787 = vpop.f32.mrf.mxu0
          %788 = vmatprep.mubr.f32.mxu0 0.0
          %789 = vmatmul.mubr.f32.gmra.mxu0 %v711
          %v790 = vpop.f32.mrf.mxu0
          %v791 = vadd.f32 %v704, %v790
          %v792 = vpop.f32.mrf.mxu0
          %793 = vmatprep.mubr.f32.mxu0 0.0
          %794 = vmatmul.mubr.f32.gmra.mxu0 %v714
          %v795 = vpop.f32.mrf.mxu0
          %v796 = vadd.f32 %v704, %v795
          %v797 = vpop.f32.mrf.mxu0
          %798 = vmatprep.mubr.f32.mxu0 0.0
          %799 = vmatmul.mubr.f32.gmra.mxu0 %v717
          %v800 = vpop.f32.mrf.mxu0
          %v801 = vadd.f32 %v704, %v800
          %v802 = vpop.f32.mrf.mxu0
          %803 = vdwg.mxu0
          %v804 = vmax.f32 %v786, 0.0
          %v805 = vmax.f32 %v791, 0.0
          %v806 = vmax.f32 %v796, 0.0
          %v807 = vmax.f32 %v801, 0.0
          %v809 = vrot.slane %v804, 1
          %v811 = vrot.slane %v804, 2
          %v813 = vrot.slane %v804, 3
          %v815 = vrot.slane %v804, 4
          %v817 = vrot.slane %v804, 5
          %v819 = vrot.slane %v804, 6
          %v821 = vrot.slane %v804, 7
          %v824 = vrot.slane %v805, 1
          %v826 = vrot.slane %v805, 2
          %v828 = vrot.slane %v805, 3
          %v830 = vrot.slane %v805, 4
          %v832 = vrot.slane %v805, 5
          %v834 = vrot.slane %v805, 6
          %v836 = vrot.slane %v805, 7
          %v839 = vrot.slane %v806, 1
          %v840 = vrot.slane %v806, 2
          %v841 = vrot.slane %v806, 3
          %v842 = vrot.slane %v806, 4
          %v843 = vrot.slane %v806, 5
          %v844 = vrot.slane %v806, 6
          %v845 = vrot.slane %v806, 7
          %v847 = vrot.slane %v807, 1
          %v848 = vrot.slane %v807, 2
          %v849 = vrot.slane %v807, 3
          %v850 = vrot.slane %v807, 4
          %v851 = vrot.slane %v807, 5
          %v852 = vrot.slane %v807, 6
          %v853 = vrot.slane %v807, 7
          %v854 = vrot.slane %v839, 7
          %v855 = vrot.slane %v840, 7
          %v856 = vrot.slane %v841, 7
          %v857 = vrot.slane %v842, 7
          %v858 = vrot.slane %v843, 7
          %v859 = vrot.slane %v844, 7
          %v860 = vrot.slane %v845, 7
          %v861 = vrot.slane %v847, 7
          %v862 = vrot.slane %v848, 7
          %v863 = vrot.slane %v849, 7
          %v864 = vrot.slane %v850, 7
          %v865 = vrot.slane %v851, 7
          %v866 = vrot.slane %v852, 7
          %v867 = vrot.slane %v853, 7
          %vm884 = vcmask 1040384
          %v885 = vsel %vm884, %v804, %v845
          %v886 = vsel %vm884, %v809, %v854
          %v887 = vsel %vm884, %v811, %v855
          %v888 = vsel %vm884, %v813, %v856
          %v889 = vsel %vm884, %v815, %v857
          %v890 = vsel %vm884, %v817, %v858
          %v891 = vsel %vm884, %v819, %v859
          %v892 = vsel %vm884, %v821, %v860
          %v893 = vsel %vm884, %v805, %v853
          %v894 = vsel %vm884, %v824, %v861
          %v895 = vsel %vm884, %v826, %v862
          %v896 = vsel %vm884, %v828, %v863
          %v897 = vsel %vm884, %v830, %v864
          %v898 = vsel %vm884, %v832, %v865
          %v899 = vsel %vm884, %v834, %v866
          %v900 = vsel %vm884, %v836, %v867
          %v901 = vpack.c.bf16 %v885, %v885
          %v902 = vpack.c.bf16 %v886, %v886
          %v903 = vpack.c.bf16 %v887, %v887
          %v904 = vpack.c.bf16 %v888, %v888
          %v905 = vpack.c.bf16 %v889, %v889
          %v906 = vpack.c.bf16 %v890, %v890
          %v907 = vpack.c.bf16 %v891, %v891
          %v908 = vpack.c.bf16 %v892, %v892
          %v909 = vpack.c.bf16 %v893, %v893
          %v910 = vpack.c.bf16 %v894, %v894
          %v911 = vpack.c.bf16 %v895, %v895
          %v912 = vpack.c.bf16 %v896, %v896
          %v913 = vpack.c.bf16 %v897, %v897
          %v914 = vpack.c.bf16 %v898, %v898
          %v915 = vpack.c.bf16 %v899, %v899
          %v916 = vpack.c.bf16 %v900, %v900
          %v933 = vcombine.low %v901, %v902
          %v934 = vcombine.low %v903, %v904
          %v935 = vcombine.low %v905, %v906
          %v936 = vcombine.low %v907, %v908
          %v938 = vunpack.c.l.s4 1966171168
          %v939 = vunpack.c.0.s8 %v938
          %v940 = vlaneseq
          %v941 = vshrl.u32 %v940, 7
          %v942 = vsub.s32 %v939, %v941
          %v943 = vrot.slane %v933, %v942
          %v945 = vunpack.c.l.s4 1966171168
          %v946 = vunpack.c.0.s8 %v945
          %v947 = vlaneseq
          %v948 = vshrl.u32 %v947, 7
          %v949 = vsub.s32 %v946, %v948
          %v950 = vrot.slane %v934, %v949
          %v952 = vunpack.c.l.s4 1966171168
          %v953 = vunpack.c.0.s8 %v952
          %v954 = vlaneseq
          %v955 = vshrl.u32 %v954, 7
          %v956 = vsub.s32 %v953, %v955
          %v957 = vrot.slane %v935, %v956
          %v959 = vunpack.c.l.s4 1966171168
          %v960 = vunpack.c.0.s8 %v959
          %v961 = vlaneseq
          %v962 = vshrl.u32 %v961, 7
          %v963 = vsub.s32 %v960, %v962
          %v964 = vrot.slane %v936, %v963
          %v965 = vcombine.low %v943, %v950
          %v966 = vcombine.low %v957, %v964
          %v968 = vunpack.c.l.s4 1966171168
          %v969 = vunpack.c.0.s8 %v968
          %v970 = vlaneseq
          %v971 = vshrl.u32 %v970, 7
          %v972 = vsub.s32 %v969, %v971
          %v973 = vrot.slane %v965, %v972
          %v975 = vunpack.c.l.s4 1966171168
          %v976 = vunpack.c.0.s8 %v975
          %v977 = vlaneseq
          %v978 = vshrl.u32 %v977, 7
          %v979 = vsub.s32 %v976, %v978
          %v980 = vrot.slane %v966, %v979
          %v981 = vcombine.low %v973, %v980
          %v982 = vcombine.low %v909, %v910
          %v983 = vcombine.low %v911, %v912
          %v984 = vcombine.low %v913, %v914
          %v985 = vcombine.low %v915, %v916
          %v987 = vunpack.c.l.s4 1966171168
          %v988 = vunpack.c.0.s8 %v987
          %v989 = vlaneseq
          %v990 = vshrl.u32 %v989, 7
          %v991 = vsub.s32 %v988, %v990
          %v992 = vrot.slane %v982, %v991
          %v994 = vunpack.c.l.s4 1966171168
          %v995 = vunpack.c.0.s8 %v994
          %v996 = vlaneseq
          %v997 = vshrl.u32 %v996, 7
          %v998 = vsub.s32 %v995, %v997
          %v999 = vrot.slane %v983, %v998
          %v1001 = vunpack.c.l.s4 1966171168
          %v1002 = vunpack.c.0.s8 %v1001
          %v1003 = vlaneseq
          %v1004 = vshrl.u32 %v1003, 7
          %v1005 = vsub.s32 %v1002, %v1004
          %v1006 = vrot.slane %v984, %v1005
          %v1008 = vunpack.c.l.s4 1966171168
          %v1009 = vunpack.c.0.s8 %v1008
          %v1010 = vlaneseq
          %v1011 = vshrl.u32 %v1010, 7
          %v1012 = vsub.s32 %v1009, %v1011
          %v1013 = vrot.slane %v985, %v1012
          %v1014 = vcombine.low %v992, %v999
          %v1015 = vcombine.low %v1006, %v1013
          %v1017 = vunpack.c.l.s4 1966171168
          %v1018 = vunpack.c.0.s8 %v1017
          %v1019 = vlaneseq
          %v1020 = vshrl.u32 %v1019, 7
          %v1021 = vsub.s32 %v1018, %v1020
          %v1022 = vrot.slane %v1014, %v1021
          %v1024 = vunpack.c.l.s4 1966171168
          %v1025 = vunpack.c.0.s8 %v1024
          %v1026 = vlaneseq
          %v1027 = vshrl.u32 %v1026, 7
          %v1028 = vsub.s32 %v1025, %v1027
          %v1029 = vrot.slane %v1015, %v1028
          %v1030 = vcombine.low %v1022, %v1029
          %1033 = vst [vmem:[#allocation2] sm:$0xff] %v981
          %1034 = vst [vmem:[#allocation2 + $0x8] sm:$0xff] %v1030
          %1035 = vst [vmem:[#allocation15] sm:$0x3] 0.0
        $region84: #{tpu_custom_call.1} parent=51 // pred_fallthru
          _
        %v1036 = vld [vmem:[#allocation2] sm:$0xff]
        %v1037 = vld [vmem:[#allocation2 + $0x8] sm:$0xff]
        %v1038 = vld [vmem:[%s381] sm:$0xff]
        %v1039 = vld [vmem:[%s381 + $0x8] sm:$0xff]
        %v1040 = vld [vmem:[%s381 + $0x10] sm:$0xff]
        %v1041 = vld [vmem:[%s381 + $0x18] sm:$0xff]
        %v1042 = vld [vmem:[%s381 + $0x20] sm:$0xff]
        %v1043 = vld [vmem:[%s381 + $0x28] sm:$0xff]
        %v1044 = vld [vmem:[%s381 + $0x30] sm:$0xff]
        %v1045 = vld [vmem:[%s381 + $0x38] sm:$0xff]
        %v1046 = vld [vmem:[%s381 + $0x40] sm:$0xff]
        %v1047 = vld [vmem:[%s381 + $0x48] sm:$0xff]
        %v1048 = vld [vmem:[%s381 + $0x50] sm:$0xff]
        %v1049 = vld [vmem:[%s381 + $0x58] sm:$0xff]
        %v1050 = vld [vmem:[%s381 + $0x60] sm:$0xff]
        %v1051 = vld [vmem:[%s381 + $0x68] sm:$0xff]
        %v1052 = vld [vmem:[%s381 + $0x70] sm:$0xff]
        %v1053 = vld [vmem:[%s381 + $0x78] sm:$0xff]
        %v1054 = vld [vmem:[%s381 + $0x80] sm:$0xff]
        %v1055 = vld [vmem:[%s381 + $0x88] sm:$0xff]
        %v1056 = vld [vmem:[%s381 + $0x90] sm:$0xff]
        %v1057 = vld [vmem:[%s381 + $0x98] sm:$0xff]
        %v1058 = vld [vmem:[%s381 + $0xa0] sm:$0xff]
        %v1059 = vld [vmem:[%s381 + $0xa8] sm:$0xff]
        %v1060 = vld [vmem:[%s381 + $0xb0] sm:$0xff]
        %v1061 = vld [vmem:[%s381 + $0xb8] sm:$0xff]
        %v1062 = vld [vmem:[%s381 + $0xc0] sm:$0xff]
        %v1063 = vld [vmem:[%s381 + $0xc8] sm:$0xff]
        %v1064 = vld [vmem:[%s381 + $0xd0] sm:$0xff]
        %v1065 = vld [vmem:[%s381 + $0xd8] sm:$0xff]
        %v1066 = vld [vmem:[%s381 + $0xe0] sm:$0xff]
        %v1067 = vld [vmem:[%s381 + $0xe8] sm:$0xff]
        %v1068 = vld [vmem:[%s381 + $0xf0] sm:$0xff]
        %v1069 = vld [vmem:[%s381 + $0xf8] sm:$0xff]
        %v1070 = vld [vmem:[%s381 + $0x100] sm:$0xff]
        %v1071 = vld [vmem:[%s381 + $0x108] sm:$0xff]
        %v1072 = vld [vmem:[%s381 + $0x110] sm:$0xff]
        %v1073 = vld [vmem:[%s381 + $0x118] sm:$0xff]
        %v1074 = vld [vmem:[%s381 + $0x120] sm:$0xff]
        %v1075 = vld [vmem:[%s381 + $0x128] sm:$0xff]
        %v1076 = vld [vmem:[%s381 + $0x130] sm:$0xff]
        %v1077 = vld [vmem:[%s381 + $0x138] sm:$0xff]
        %v1078 = vld [vmem:[%s381 + $0x140] sm:$0xff]
        %v1079 = vld [vmem:[%s381 + $0x148] sm:$0xff]
        %v1080 = vld [vmem:[%s381 + $0x150] sm:$0xff]
        %v1081 = vld [vmem:[%s381 + $0x158] sm:$0xff]
        %v1082 = vld [vmem:[%s381 + $0x160] sm:$0xff]
        %v1083 = vld [vmem:[%s381 + $0x168] sm:$0xff]
        %v1084 = vld [vmem:[%s381 + $0x170] sm:$0xff]
        %v1085 = vld [vmem:[%s381 + $0x178] sm:$0xff]
        %v1086 = vld [vmem:[%s381 + $0x180] sm:$0xff]
        %v1087 = vld [vmem:[%s381 + $0x188] sm:$0xff]
        %v1088 = vld [vmem:[%s381 + $0x190] sm:$0xff]
        %v1089 = vld [vmem:[%s381 + $0x198] sm:$0xff]
        %v1090 = vld [vmem:[%s381 + $0x1a0] sm:$0xff]
        %v1091 = vld [vmem:[%s381 + $0x1a8] sm:$0xff]
        %v1092 = vld [vmem:[%s381 + $0x1b0] sm:$0xff]
        %v1093 = vld [vmem:[%s381 + $0x1b8] sm:$0xff]
        %v1094 = vld [vmem:[%s381 + $0x1c0] sm:$0xff]
        %v1095 = vld [vmem:[%s381 + $0x1c8] sm:$0xff]
        %v1096 = vld [vmem:[%s381 + $0x1d0] sm:$0xff]
        %v1097 = vld [vmem:[%s381 + $0x1d8] sm:$0xff]
        %v1098 = vld [vmem:[%s381 + $0x1e0] sm:$0xff]
        %v1099 = vld [vmem:[%s381 + $0x1e8] sm:$0xff]
        %v1100 = vld [vmem:[%s381 + $0x1f0] sm:$0xff]
        %v1101 = vld [vmem:[%s381 + $0x1f8] sm:$0xff]
        %v1102 = vld [vmem:[%s381 + $0x200] sm:$0xff]
        %v1103 = vld [vmem:[%s381 + $0x208] sm:$0xff]
        %v1104 = vld [vmem:[%s381 + $0x210] sm:$0xff]
        %v1105 = vld [vmem:[%s381 + $0x218] sm:$0xff]
        %v1106 = vld [vmem:[%s381 + $0x220] sm:$0xff]
        %v1107 = vld [vmem:[%s381 + $0x228] sm:$0xff]
        %v1108 = vld [vmem:[%s381 + $0x230] sm:$0xff]
        %v1109 = vld [vmem:[%s381 + $0x238] sm:$0xff]
        %v1110 = vld [vmem:[%s381 + $0x240] sm:$0xff]
        %v1111 = vld [vmem:[%s381 + $0x248] sm:$0xff]
        %v1112 = vld [vmem:[%s381 + $0x250] sm:$0xff]
        %v1113 = vld [vmem:[%s381 + $0x258] sm:$0xff]
        %v1114 = vld [vmem:[%s381 + $0x260] sm:$0xff]
        %v1115 = vld [vmem:[%s381 + $0x268] sm:$0xff]
        %v1116 = vld [vmem:[%s381 + $0x270] sm:$0xff]
        %v1117 = vld [vmem:[%s381 + $0x278] sm:$0xff]
        %v1118 = vld [vmem:[%s381 + $0x280] sm:$0xff]
        %v1119 = vld [vmem:[%s381 + $0x288] sm:$0xff]
        %v1120 = vld [vmem:[%s381 + $0x290] sm:$0xff]
        %v1121 = vld [vmem:[%s381 + $0x298] sm:$0xff]
        %v1122 = vld [vmem:[%s381 + $0x2a0] sm:$0xff]
        %v1123 = vld [vmem:[%s381 + $0x2a8] sm:$0xff]
        %v1124 = vld [vmem:[%s381 + $0x2b0] sm:$0xff]
        %v1125 = vld [vmem:[%s381 + $0x2b8] sm:$0xff]
        %v1126 = vld [vmem:[%s381 + $0x2c0] sm:$0xff]
        %v1127 = vld [vmem:[%s381 + $0x2c8] sm:$0xff]
        %v1128 = vld [vmem:[%s381 + $0x2d0] sm:$0xff]
        %v1129 = vld [vmem:[%s381 + $0x2d8] sm:$0xff]
        %v1130 = vld [vmem:[%s381 + $0x2e0] sm:$0xff]
        %v1131 = vld [vmem:[%s381 + $0x2e8] sm:$0xff]
        %v1132 = vld [vmem:[%s381 + $0x2f0] sm:$0xff]
        %v1133 = vld [vmem:[%s381 + $0x2f8] sm:$0xff]
        %v1134 = vld [vmem:[%s381 + $0x300] sm:$0xff]
        %v1135 = vld [vmem:[%s381 + $0x308] sm:$0xff]
        %v1136 = vld [vmem:[%s381 + $0x310] sm:$0xff]
        %v1137 = vld [vmem:[%s381 + $0x318] sm:$0xff]
        %v1138 = vld [vmem:[%s381 + $0x320] sm:$0xff]
        %v1139 = vld [vmem:[%s381 + $0x328] sm:$0xff]
        %v1140 = vld [vmem:[%s381 + $0x330] sm:$0xff]
        %v1141 = vld [vmem:[%s381 + $0x338] sm:$0xff]
        %v1142 = vld [vmem:[%s381 + $0x340] sm:$0xff]
        %v1143 = vld [vmem:[%s381 + $0x348] sm:$0xff]
        %v1144 = vld [vmem:[%s381 + $0x350] sm:$0xff]
        %v1145 = vld [vmem:[%s381 + $0x358] sm:$0xff]
        %v1146 = vld [vmem:[%s381 + $0x360] sm:$0xff]
        %v1147 = vld [vmem:[%s381 + $0x368] sm:$0xff]
        %v1148 = vld [vmem:[%s381 + $0x370] sm:$0xff]
        %v1149 = vld [vmem:[%s381 + $0x378] sm:$0xff]
        %v1150 = vld [vmem:[%s381 + $0x380] sm:$0xff]
        %v1151 = vld [vmem:[%s381 + $0x388] sm:$0xff]
        %v1152 = vld [vmem:[%s381 + $0x390] sm:$0xff]
        %v1153 = vld [vmem:[%s381 + $0x398] sm:$0xff]
        %v1154 = vld [vmem:[%s381 + $0x3a0] sm:$0xff]
        %v1155 = vld [vmem:[%s381 + $0x3a8] sm:$0xff]
        %v1156 = vld [vmem:[%s381 + $0x3b0] sm:$0xff]
        %v1157 = vld [vmem:[%s381 + $0x3b8] sm:$0xff]
        %v1158 = vld [vmem:[%s381 + $0x3c0] sm:$0xff]
        %v1159 = vld [vmem:[%s381 + $0x3c8] sm:$0xff]
        %v1160 = vld [vmem:[%s381 + $0x3d0] sm:$0xff]
        %v1161 = vld [vmem:[%s381 + $0x3d8] sm:$0xff]
        %v1162 = vld [vmem:[%s381 + $0x3e0] sm:$0xff]
        %v1163 = vld [vmem:[%s381 + $0x3e8] sm:$0xff]
        %v1164 = vld [vmem:[%s381 + $0x3f0] sm:$0xff]
        %v1165 = vld [vmem:[%s381 + $0x3f8] sm:$0xff]
        %v1166 = vld [vmem:[%s381 + $0x400] sm:$0xff]
        %v1167 = vld [vmem:[%s381 + $0x408] sm:$0xff]
        %v1168 = vld [vmem:[%s381 + $0x410] sm:$0xff]
        %v1169 = vld [vmem:[%s381 + $0x418] sm:$0xff]
        %v1170 = vld [vmem:[%s381 + $0x420] sm:$0xff]
        %v1171 = vld [vmem:[%s381 + $0x428] sm:$0xff]
        %v1172 = vld [vmem:[%s381 + $0x430] sm:$0xff]
        %v1173 = vld [vmem:[%s381 + $0x438] sm:$0xff]
        %v1174 = vld [vmem:[%s381 + $0x440] sm:$0xff]
        %v1175 = vld [vmem:[%s381 + $0x448] sm:$0xff]
        %v1176 = vld [vmem:[%s381 + $0x450] sm:$0xff]
        %v1177 = vld [vmem:[%s381 + $0x458] sm:$0xff]
        %v1178 = vld [vmem:[%s381 + $0x460] sm:$0xff]
        %v1179 = vld [vmem:[%s381 + $0x468] sm:$0xff]
        %v1180 = vld [vmem:[%s381 + $0x470] sm:$0xff]
        %v1181 = vld [vmem:[%s381 + $0x478] sm:$0xff]
        %v1182 = vld [vmem:[%s381 + $0x480] sm:$0xff]
        %v1183 = vld [vmem:[%s381 + $0x488] sm:$0xff]
        %v1184 = vld [vmem:[%s381 + $0x490] sm:$0xff]
        %v1185 = vld [vmem:[%s381 + $0x498] sm:$0xff]
        %v1186 = vld [vmem:[%s381 + $0x4a0] sm:$0xff]
        %v1187 = vld [vmem:[%s381 + $0x4a8] sm:$0xff]
        %v1188 = vld [vmem:[%s381 + $0x4b0] sm:$0xff]
        %v1189 = vld [vmem:[%s381 + $0x4b8] sm:$0xff]
        %v1190 = vld [vmem:[%s381 + $0x4c0] sm:$0xff]
        %v1191 = vld [vmem:[%s381 + $0x4c8] sm:$0xff]
        %v1192 = vld [vmem:[%s381 + $0x4d0] sm:$0xff]
        %v1193 = vld [vmem:[%s381 + $0x4d8] sm:$0xff]
        %v1194 = vld [vmem:[%s381 + $0x4e0] sm:$0xff]
        %v1195 = vld [vmem:[%s381 + $0x4e8] sm:$0xff]
        %v1196 = vld [vmem:[%s381 + $0x4f0] sm:$0xff]
        %v1197 = vld [vmem:[%s381 + $0x4f8] sm:$0xff]
        %v1198 = vld [vmem:[%s381 + $0x500] sm:$0xff]
        %v1199 = vld [vmem:[%s381 + $0x508] sm:$0xff]
        %v1200 = vld [vmem:[%s381 + $0x510] sm:$0xff]
        %v1201 = vld [vmem:[%s381 + $0x518] sm:$0xff]
        %v1202 = vld [vmem:[%s381 + $0x520] sm:$0xff]
        %v1203 = vld [vmem:[%s381 + $0x528] sm:$0xff]
        %v1204 = vld [vmem:[%s381 + $0x530] sm:$0xff]
        %v1205 = vld [vmem:[%s381 + $0x538] sm:$0xff]
        %v1206 = vld [vmem:[%s381 + $0x540] sm:$0xff]
        %v1207 = vld [vmem:[%s381 + $0x548] sm:$0xff]
        %v1208 = vld [vmem:[%s381 + $0x550] sm:$0xff]
        %v1209 = vld [vmem:[%s381 + $0x558] sm:$0xff]
        %v1210 = vld [vmem:[%s381 + $0x560] sm:$0xff]
        %v1211 = vld [vmem:[%s381 + $0x568] sm:$0xff]
        %v1212 = vld [vmem:[%s381 + $0x570] sm:$0xff]
        %v1213 = vld [vmem:[%s381 + $0x578] sm:$0xff]
        %v1214 = vld [vmem:[%s381 + $0x580] sm:$0xff]
        %v1215 = vld [vmem:[%s381 + $0x588] sm:$0xff]
        %v1216 = vld [vmem:[%s381 + $0x590] sm:$0xff]
        %v1217 = vld [vmem:[%s381 + $0x598] sm:$0xff]
        %v1218 = vld [vmem:[%s381 + $0x5a0] sm:$0xff]
        %v1219 = vld [vmem:[%s381 + $0x5a8] sm:$0xff]
        %v1220 = vld [vmem:[%s381 + $0x5b0] sm:$0xff]
        %v1221 = vld [vmem:[%s381 + $0x5b8] sm:$0xff]
        %v1222 = vld [vmem:[%s381 + $0x5c0] sm:$0xff]
        %v1223 = vld [vmem:[%s381 + $0x5c8] sm:$0xff]
        %v1224 = vld [vmem:[%s381 + $0x5d0] sm:$0xff]
        %v1225 = vld [vmem:[%s381 + $0x5d8] sm:$0xff]
        %v1226 = vld [vmem:[%s381 + $0x5e0] sm:$0xff]
        %v1227 = vld [vmem:[%s381 + $0x5e8] sm:$0xff]
        %v1228 = vld [vmem:[%s381 + $0x5f0] sm:$0xff]
        %v1229 = vld [vmem:[%s381 + $0x5f8] sm:$0xff]
        %v1230 = vld [vmem:[%s381 + $0x600] sm:$0xff]
        %v1231 = vld [vmem:[%s381 + $0x608] sm:$0xff]
        %v1232 = vld [vmem:[%s381 + $0x610] sm:$0xff]
        %v1233 = vld [vmem:[%s381 + $0x618] sm:$0xff]
        %v1234 = vld [vmem:[%s381 + $0x620] sm:$0xff]
        %v1235 = vld [vmem:[%s381 + $0x628] sm:$0xff]
        %v1236 = vld [vmem:[%s381 + $0x630] sm:$0xff]
        %v1237 = vld [vmem:[%s381 + $0x638] sm:$0xff]
        %v1238 = vld [vmem:[%s381 + $0x640] sm:$0xff]
        %v1239 = vld [vmem:[%s381 + $0x648] sm:$0xff]
        %v1240 = vld [vmem:[%s381 + $0x650] sm:$0xff]
        %v1241 = vld [vmem:[%s381 + $0x658] sm:$0xff]
        %v1242 = vld [vmem:[%s381 + $0x660] sm:$0xff]
        %v1243 = vld [vmem:[%s381 + $0x668] sm:$0xff]
        %v1244 = vld [vmem:[%s381 + $0x670] sm:$0xff]
        %v1245 = vld [vmem:[%s381 + $0x678] sm:$0xff]
        %v1246 = vld [vmem:[%s381 + $0x680] sm:$0xff]
        %v1247 = vld [vmem:[%s381 + $0x688] sm:$0xff]
        %v1248 = vld [vmem:[%s381 + $0x690] sm:$0xff]
        %v1249 = vld [vmem:[%s381 + $0x698] sm:$0xff]
        %v1250 = vld [vmem:[%s381 + $0x6a0] sm:$0xff]
        %v1251 = vld [vmem:[%s381 + $0x6a8] sm:$0xff]
        %v1252 = vld [vmem:[%s381 + $0x6b0] sm:$0xff]
        %v1253 = vld [vmem:[%s381 + $0x6b8] sm:$0xff]
        %v1254 = vld [vmem:[%s381 + $0x6c0] sm:$0xff]
        %v1255 = vld [vmem:[%s381 + $0x6c8] sm:$0xff]
        %v1256 = vld [vmem:[%s381 + $0x6d0] sm:$0xff]
        %v1257 = vld [vmem:[%s381 + $0x6d8] sm:$0xff]
        %v1258 = vld [vmem:[%s381 + $0x6e0] sm:$0xff]
        %v1259 = vld [vmem:[%s381 + $0x6e8] sm:$0xff]
        %v1260 = vld [vmem:[%s381 + $0x6f0] sm:$0xff]
        %v1261 = vld [vmem:[%s381 + $0x6f8] sm:$0xff]
        %v1262 = vld [vmem:[%s381 + $0x700] sm:$0xff]
        %v1263 = vld [vmem:[%s381 + $0x708] sm:$0xff]
        %v1264 = vld [vmem:[%s381 + $0x710] sm:$0xff]
        %v1265 = vld [vmem:[%s381 + $0x718] sm:$0xff]
        %v1266 = vld [vmem:[%s381 + $0x720] sm:$0xff]
        %v1267 = vld [vmem:[%s381 + $0x728] sm:$0xff]
        %v1268 = vld [vmem:[%s381 + $0x730] sm:$0xff]
        %v1269 = vld [vmem:[%s381 + $0x738] sm:$0xff]
        %v1270 = vld [vmem:[%s381 + $0x740] sm:$0xff]
        %v1271 = vld [vmem:[%s381 + $0x748] sm:$0xff]
        %v1272 = vld [vmem:[%s381 + $0x750] sm:$0xff]
        %v1273 = vld [vmem:[%s381 + $0x758] sm:$0xff]
        %v1274 = vld [vmem:[%s381 + $0x760] sm:$0xff]
        %v1275 = vld [vmem:[%s381 + $0x768] sm:$0xff]
        %v1276 = vld [vmem:[%s381 + $0x770] sm:$0xff]
        %v1277 = vld [vmem:[%s381 + $0x778] sm:$0xff]
        %v1278 = vld [vmem:[%s381 + $0x780] sm:$0xff]
        %v1279 = vld [vmem:[%s381 + $0x788] sm:$0xff]
        %v1280 = vld [vmem:[%s381 + $0x790] sm:$0xff]
        %v1281 = vld [vmem:[%s381 + $0x798] sm:$0xff]
        %v1282 = vld [vmem:[%s381 + $0x7a0] sm:$0xff]
        %v1283 = vld [vmem:[%s381 + $0x7a8] sm:$0xff]
        %v1284 = vld [vmem:[%s381 + $0x7b0] sm:$0xff]
        %v1285 = vld [vmem:[%s381 + $0x7b8] sm:$0xff]
        %v1286 = vld [vmem:[%s381 + $0x7c0] sm:$0xff]
        %v1287 = vld [vmem:[%s381 + $0x7c8] sm:$0xff]
        %v1288 = vld [vmem:[%s381 + $0x7d0] sm:$0xff]
        %v1289 = vld [vmem:[%s381 + $0x7d8] sm:$0xff]
        %v1290 = vld [vmem:[%s381 + $0x7e0] sm:$0xff]
        %v1291 = vld [vmem:[%s381 + $0x7e8] sm:$0xff]
        %v1292 = vld [vmem:[%s381 + $0x7f0] sm:$0xff]
        %v1293 = vld [vmem:[%s381 + $0x7f8] sm:$0xff]
        %v1294 = vld [vmem:[%s390] sm:$0x3]
        %v1296 = vlaneseq
        %v1297 = vshrl.u32 %v1296, 7
        %v1298 = vsub.s32 0, %v1297
        %v1299 = vrot.slane %v1294, %v1298
        %v1300 = vlaneseq
        %v1301 = vshrl.u32 %v1300, 7
        %v1302 = vsub.s32 1, %v1301
        %v1303 = vrot.slane %v1294, %v1302
        %v1308 = vcombine.high %v1036, %v1036
        %v1310 = vunpack.c.l.s4 1966171168
        %v1311 = vunpack.c.0.s8 %v1310
        %v1312 = vlaneseq
        %v1313 = vshrl.u32 %v1312, 7
        %v1314 = vsub.s32 %v1311, %v1313
        %v1315 = vrot.slane %v1036, %v1314
        %v1317 = vunpack.c.l.s4 1966171168
        %v1318 = vunpack.c.0.s8 %v1317
        %v1319 = vlaneseq
        %v1320 = vshrl.u32 %v1319, 7
        %v1321 = vsub.s32 %v1318, %v1320
        %v1322 = vrot.slane %v1308, %v1321
        %v1323 = vcombine.high %v1315, %v1315
        %v1324 = vcombine.high %v1322, %v1322
        %v1326 = vunpack.c.l.s4 1966171168
        %v1327 = vunpack.c.0.s8 %v1326
        %v1328 = vlaneseq
        %v1329 = vshrl.u32 %v1328, 7
        %v1330 = vsub.s32 %v1327, %v1329
        %v1331 = vrot.slane %v1315, %v1330
        %v1333 = vunpack.c.l.s4 1966171168
        %v1334 = vunpack.c.0.s8 %v1333
        %v1335 = vlaneseq
        %v1336 = vshrl.u32 %v1335, 7
        %v1337 = vsub.s32 %v1334, %v1336
        %v1338 = vrot.slane %v1322, %v1337
        %v1340 = vunpack.c.l.s4 1966171168
        %v1341 = vunpack.c.0.s8 %v1340
        %v1342 = vlaneseq
        %v1343 = vshrl.u32 %v1342, 7
        %v1344 = vsub.s32 %v1341, %v1343
        %v1345 = vrot.slane %v1323, %v1344
        %v1347 = vunpack.c.l.s4 1966171168
        %v1348 = vunpack.c.0.s8 %v1347
        %v1349 = vlaneseq
        %v1350 = vshrl.u32 %v1349, 7
        %v1351 = vsub.s32 %v1348, %v1350
        %v1352 = vrot.slane %v1324, %v1351
        %v1353 = vcombine.high %v1331, %v1331
        %v1354 = vcombine.high %v1338, %v1338
        %v1355 = vcombine.high %v1345, %v1345
        %v1356 = vcombine.high %v1352, %v1352
        %v1357 = vcombine.high %v1037, %v1037
        %v1359 = vunpack.c.l.s4 1966171168
        %v1360 = vunpack.c.0.s8 %v1359
        %v1361 = vlaneseq
        %v1362 = vshrl.u32 %v1361, 7
        %v1363 = vsub.s32 %v1360, %v1362
        %v1364 = vrot.slane %v1037, %v1363
        %v1366 = vunpack.c.l.s4 1966171168
        %v1367 = vunpack.c.0.s8 %v1366
        %v1368 = vlaneseq
        %v1369 = vshrl.u32 %v1368, 7
        %v1370 = vsub.s32 %v1367, %v1369
        %v1371 = vrot.slane %v1357, %v1370
        %v1372 = vcombine.high %v1364, %v1364
        %v1373 = vcombine.high %v1371, %v1371
        %v1375 = vunpack.c.l.s4 1966171168
        %v1376 = vunpack.c.0.s8 %v1375
        %v1377 = vlaneseq
        %v1378 = vshrl.u32 %v1377, 7
        %v1379 = vsub.s32 %v1376, %v1378
        %v1380 = vrot.slane %v1364, %v1379
        %v1382 = vunpack.c.l.s4 1966171168
        %v1383 = vunpack.c.0.s8 %v1382
        %v1384 = vlaneseq
        %v1385 = vshrl.u32 %v1384, 7
        %v1386 = vsub.s32 %v1383, %v1385
        %v1387 = vrot.slane %v1371, %v1386
        %v1389 = vunpack.c.l.s4 1966171168
        %v1390 = vunpack.c.0.s8 %v1389
        %v1391 = vlaneseq
        %v1392 = vshrl.u32 %v1391, 7
        %v1393 = vsub.s32 %v1390, %v1392
        %v1394 = vrot.slane %v1372, %v1393
        %v1396 = vunpack.c.l.s4 1966171168
        %v1397 = vunpack.c.0.s8 %v1396
        %v1398 = vlaneseq
        %v1399 = vshrl.u32 %v1398, 7
        %v1400 = vsub.s32 %v1397, %v1399
        %v1401 = vrot.slane %v1373, %v1400
        %v1402 = vcombine.high %v1380, %v1380
        %v1403 = vcombine.high %v1387, %v1387
        %v1404 = vcombine.high %v1394, %v1394
        %v1405 = vcombine.high %v1401, %v1401
        %v1678 = vunpack.c.l.b16 %v1038
        %v1679 = vunpack.c.h.b16 %v1038
        %v1680 = vunpack.c.l.b16 %v1039
        %v1681 = vunpack.c.h.b16 %v1039
        %v1682 = vunpack.c.l.b16 %v1040
        %v1683 = vunpack.c.h.b16 %v1040
        %v1684 = vunpack.c.l.b16 %v1041
        %v1685 = vunpack.c.h.b16 %v1041
        %v1686 = vunpack.c.l.b16 %v1042
        %v1687 = vunpack.c.h.b16 %v1042
        %v1688 = vunpack.c.l.b16 %v1043
        %v1689 = vunpack.c.h.b16 %v1043
        %v1690 = vunpack.c.l.b16 %v1044
        %v1691 = vunpack.c.h.b16 %v1044
        %v1692 = vunpack.c.l.b16 %v1045
        %v1693 = vunpack.c.h.b16 %v1045
        %v1694 = vunpack.c.l.b16 %v1046
        %v1695 = vunpack.c.h.b16 %v1046
        %v1696 = vunpack.c.l.b16 %v1047
        %v1697 = vunpack.c.h.b16 %v1047
        %v1698 = vunpack.c.l.b16 %v1048
        %v1699 = vunpack.c.h.b16 %v1048
        %v1700 = vunpack.c.l.b16 %v1049
        %v1701 = vunpack.c.h.b16 %v1049
        %v1702 = vunpack.c.l.b16 %v1050
        %v1703 = vunpack.c.h.b16 %v1050
        %v1704 = vunpack.c.l.b16 %v1051
        %v1705 = vunpack.c.h.b16 %v1051
        %v1706 = vunpack.c.l.b16 %v1052
        %v1707 = vunpack.c.h.b16 %v1052
        %v1708 = vunpack.c.l.b16 %v1053
        %v1709 = vunpack.c.h.b16 %v1053
        %v1710 = vunpack.c.l.b16 %v1054
        %v1711 = vunpack.c.h.b16 %v1054
        %v1712 = vunpack.c.l.b16 %v1055
        %v1713 = vunpack.c.h.b16 %v1055
        %v1714 = vunpack.c.l.b16 %v1056
        %v1715 = vunpack.c.h.b16 %v1056
        %v1716 = vunpack.c.l.b16 %v1057
        %v1717 = vunpack.c.h.b16 %v1057
        %v1718 = vunpack.c.l.b16 %v1058
        %v1719 = vunpack.c.h.b16 %v1058
        %v1720 = vunpack.c.l.b16 %v1059
        %v1721 = vunpack.c.h.b16 %v1059
        %v1722 = vunpack.c.l.b16 %v1060
        %v1723 = vunpack.c.h.b16 %v1060
        %v1724 = vunpack.c.l.b16 %v1061
        %v1725 = vunpack.c.h.b16 %v1061
        %v1726 = vunpack.c.l.b16 %v1062
        %v1727 = vunpack.c.h.b16 %v1062
        %v1728 = vunpack.c.l.b16 %v1063
        %v1729 = vunpack.c.h.b16 %v1063
        %v1730 = vunpack.c.l.b16 %v1064
        %v1731 = vunpack.c.h.b16 %v1064
        %v1732 = vunpack.c.l.b16 %v1065
        %v1733 = vunpack.c.h.b16 %v1065
        %v1734 = vunpack.c.l.b16 %v1066
        %v1735 = vunpack.c.h.b16 %v1066
        %v1736 = vunpack.c.l.b16 %v1067
        %v1737 = vunpack.c.h.b16 %v1067
        %v1738 = vunpack.c.l.b16 %v1068
        %v1739 = vunpack.c.h.b16 %v1068
        %v1740 = vunpack.c.l.b16 %v1069
        %v1741 = vunpack.c.h.b16 %v1069
        %v1742 = vunpack.c.l.b16 %v1070
        %v1743 = vunpack.c.h.b16 %v1070
        %v1744 = vunpack.c.l.b16 %v1071
        %v1745 = vunpack.c.h.b16 %v1071
        %v1746 = vunpack.c.l.b16 %v1072
        %v1747 = vunpack.c.h.b16 %v1072
        %v1748 = vunpack.c.l.b16 %v1073
        %v1749 = vunpack.c.h.b16 %v1073
        %v1750 = vunpack.c.l.b16 %v1074
        %v1751 = vunpack.c.h.b16 %v1074
        %v1752 = vunpack.c.l.b16 %v1075
        %v1753 = vunpack.c.h.b16 %v1075
        %v1754 = vunpack.c.l.b16 %v1076
        %v1755 = vunpack.c.h.b16 %v1076
        %v1756 = vunpack.c.l.b16 %v1077
        %v1757 = vunpack.c.h.b16 %v1077
        %v1758 = vunpack.c.l.b16 %v1078
        %v1759 = vunpack.c.h.b16 %v1078
        %v1760 = vunpack.c.l.b16 %v1079
        %v1761 = vunpack.c.h.b16 %v1079
        %v1762 = vunpack.c.l.b16 %v1080
        %v1763 = vunpack.c.h.b16 %v1080
        %v1764 = vunpack.c.l.b16 %v1081
        %v1765 = vunpack.c.h.b16 %v1081
        %v1766 = vunpack.c.l.b16 %v1082
        %v1767 = vunpack.c.h.b16 %v1082
        %v1768 = vunpack.c.l.b16 %v1083
        %v1769 = vunpack.c.h.b16 %v1083
        %v1770 = vunpack.c.l.b16 %v1084
        %v1771 = vunpack.c.h.b16 %v1084
        %v1772 = vunpack.c.l.b16 %v1085
        %v1773 = vunpack.c.h.b16 %v1085
        %v1774 = vunpack.c.l.b16 %v1086
        %v1775 = vunpack.c.h.b16 %v1086
        %v1776 = vunpack.c.l.b16 %v1087
        %v1777 = vunpack.c.h.b16 %v1087
        %v1778 = vunpack.c.l.b16 %v1088
        %v1779 = vunpack.c.h.b16 %v1088
        %v1780 = vunpack.c.l.b16 %v1089
        %v1781 = vunpack.c.h.b16 %v1089
        %v1782 = vunpack.c.l.b16 %v1090
        %v1783 = vunpack.c.h.b16 %v1090
        %v1784 = vunpack.c.l.b16 %v1091
        %v1785 = vunpack.c.h.b16 %v1091
        %v1786 = vunpack.c.l.b16 %v1092
        %v1787 = vunpack.c.h.b16 %v1092
        %v1788 = vunpack.c.l.b16 %v1093
        %v1789 = vunpack.c.h.b16 %v1093
        %v1790 = vunpack.c.l.b16 %v1094
        %v1791 = vunpack.c.h.b16 %v1094
        %v1792 = vunpack.c.l.b16 %v1095
        %v1793 = vunpack.c.h.b16 %v1095
        %v1794 = vunpack.c.l.b16 %v1096
        %v1795 = vunpack.c.h.b16 %v1096
        %v1796 = vunpack.c.l.b16 %v1097
        %v1797 = vunpack.c.h.b16 %v1097
        %v1798 = vunpack.c.l.b16 %v1098
        %v1799 = vunpack.c.h.b16 %v1098
        %v1800 = vunpack.c.l.b16 %v1099
        %v1801 = vunpack.c.h.b16 %v1099
        %v1802 = vunpack.c.l.b16 %v1100
        %v1803 = vunpack.c.h.b16 %v1100
        %v1804 = vunpack.c.l.b16 %v1101
        %v1805 = vunpack.c.h.b16 %v1101
        %v1806 = vunpack.c.l.b16 %v1102
        %v1807 = vunpack.c.h.b16 %v1102
        %v1808 = vunpack.c.l.b16 %v1103
        %v1809 = vunpack.c.h.b16 %v1103
        %v1810 = vunpack.c.l.b16 %v1104
        %v1811 = vunpack.c.h.b16 %v1104
        %v1812 = vunpack.c.l.b16 %v1105
        %v1813 = vunpack.c.h.b16 %v1105
        %v1814 = vunpack.c.l.b16 %v1106
        %v1815 = vunpack.c.h.b16 %v1106
        %v1816 = vunpack.c.l.b16 %v1107
        %v1817 = vunpack.c.h.b16 %v1107
        %v1818 = vunpack.c.l.b16 %v1108
        %v1819 = vunpack.c.h.b16 %v1108
        %v1820 = vunpack.c.l.b16 %v1109
        %v1821 = vunpack.c.h.b16 %v1109
        %v1822 = vunpack.c.l.b16 %v1110
        %v1823 = vunpack.c.h.b16 %v1110
        %v1824 = vunpack.c.l.b16 %v1111
        %v1825 = vunpack.c.h.b16 %v1111
        %v1826 = vunpack.c.l.b16 %v1112
        %v1827 = vunpack.c.h.b16 %v1112
        %v1828 = vunpack.c.l.b16 %v1113
        %v1829 = vunpack.c.h.b16 %v1113
        %v1830 = vunpack.c.l.b16 %v1114
        %v1831 = vunpack.c.h.b16 %v1114
        %v1832 = vunpack.c.l.b16 %v1115
        %v1833 = vunpack.c.h.b16 %v1115
        %v1834 = vunpack.c.l.b16 %v1116
        %v1835 = vunpack.c.h.b16 %v1116
        %v1836 = vunpack.c.l.b16 %v1117
        %v1837 = vunpack.c.h.b16 %v1117
        %v1838 = vunpack.c.l.b16 %v1118
        %v1839 = vunpack.c.h.b16 %v1118
        %v1840 = vunpack.c.l.b16 %v1119
        %v1841 = vunpack.c.h.b16 %v1119
        %v1842 = vunpack.c.l.b16 %v1120
        %v1843 = vunpack.c.h.b16 %v1120
        %v1844 = vunpack.c.l.b16 %v1121
        %v1845 = vunpack.c.h.b16 %v1121
        %v1846 = vunpack.c.l.b16 %v1122
        %v1847 = vunpack.c.h.b16 %v1122
        %v1848 = vunpack.c.l.b16 %v1123
        %v1849 = vunpack.c.h.b16 %v1123
        %v1850 = vunpack.c.l.b16 %v1124
        %v1851 = vunpack.c.h.b16 %v1124
        %v1852 = vunpack.c.l.b16 %v1125
        %v1853 = vunpack.c.h.b16 %v1125
        %v1854 = vunpack.c.l.b16 %v1126
        %v1855 = vunpack.c.h.b16 %v1126
        %v1856 = vunpack.c.l.b16 %v1127
        %v1857 = vunpack.c.h.b16 %v1127
        %v1858 = vunpack.c.l.b16 %v1128
        %v1859 = vunpack.c.h.b16 %v1128
        %v1860 = vunpack.c.l.b16 %v1129
        %v1861 = vunpack.c.h.b16 %v1129
        %v1862 = vunpack.c.l.b16 %v1130
        %v1863 = vunpack.c.h.b16 %v1130
        %v1864 = vunpack.c.l.b16 %v1131
        %v1865 = vunpack.c.h.b16 %v1131
        %v1866 = vunpack.c.l.b16 %v1132
        %v1867 = vunpack.c.h.b16 %v1132
        %v1868 = vunpack.c.l.b16 %v1133
        %v1869 = vunpack.c.h.b16 %v1133
        %v1870 = vunpack.c.l.b16 %v1134
        %v1871 = vunpack.c.h.b16 %v1134
        %v1872 = vunpack.c.l.b16 %v1135
        %v1873 = vunpack.c.h.b16 %v1135
        %v1874 = vunpack.c.l.b16 %v1136
        %v1875 = vunpack.c.h.b16 %v1136
        %v1876 = vunpack.c.l.b16 %v1137
        %v1877 = vunpack.c.h.b16 %v1137
        %v1878 = vunpack.c.l.b16 %v1138
        %v1879 = vunpack.c.h.b16 %v1138
        %v1880 = vunpack.c.l.b16 %v1139
        %v1881 = vunpack.c.h.b16 %v1139
        %v1882 = vunpack.c.l.b16 %v1140
        %v1883 = vunpack.c.h.b16 %v1140
        %v1884 = vunpack.c.l.b16 %v1141
        %v1885 = vunpack.c.h.b16 %v1141
        %v1886 = vunpack.c.l.b16 %v1142
        %v1887 = vunpack.c.h.b16 %v1142
        %v1888 = vunpack.c.l.b16 %v1143
        %v1889 = vunpack.c.h.b16 %v1143
        %v1890 = vunpack.c.l.b16 %v1144
        %v1891 = vunpack.c.h.b16 %v1144
        %v1892 = vunpack.c.l.b16 %v1145
        %v1893 = vunpack.c.h.b16 %v1145
        %v1894 = vunpack.c.l.b16 %v1146
        %v1895 = vunpack.c.h.b16 %v1146
        %v1896 = vunpack.c.l.b16 %v1147
        %v1897 = vunpack.c.h.b16 %v1147
        %v1898 = vunpack.c.l.b16 %v1148
        %v1899 = vunpack.c.h.b16 %v1148
        %v1900 = vunpack.c.l.b16 %v1149
        %v1901 = vunpack.c.h.b16 %v1149
        %v1902 = vunpack.c.l.b16 %v1150
        %v1903 = vunpack.c.h.b16 %v1150
        %v1904 = vunpack.c.l.b16 %v1151
        %v1905 = vunpack.c.h.b16 %v1151
        %v1906 = vunpack.c.l.b16 %v1152
        %v1907 = vunpack.c.h.b16 %v1152
        %v1908 = vunpack.c.l.b16 %v1153
        %v1909 = vunpack.c.h.b16 %v1153
        %v1910 = vunpack.c.l.b16 %v1154
        %v1911 = vunpack.c.h.b16 %v1154
        %v1912 = vunpack.c.l.b16 %v1155
        %v1913 = vunpack.c.h.b16 %v1155
        %v1914 = vunpack.c.l.b16 %v1156
        %v1915 = vunpack.c.h.b16 %v1156
        %v1916 = vunpack.c.l.b16 %v1157
        %v1917 = vunpack.c.h.b16 %v1157
        %v1918 = vunpack.c.l.b16 %v1158
        %v1919 = vunpack.c.h.b16 %v1158
        %v1920 = vunpack.c.l.b16 %v1159
        %v1921 = vunpack.c.h.b16 %v1159
        %v1922 = vunpack.c.l.b16 %v1160
        %v1923 = vunpack.c.h.b16 %v1160
        %v1924 = vunpack.c.l.b16 %v1161
        %v1925 = vunpack.c.h.b16 %v1161
        %v1926 = vunpack.c.l.b16 %v1162
        %v1927 = vunpack.c.h.b16 %v1162
        %v1928 = vunpack.c.l.b16 %v1163
        %v1929 = vunpack.c.h.b16 %v1163
        %v1930 = vunpack.c.l.b16 %v1164
        %v1931 = vunpack.c.h.b16 %v1164
        %v1932 = vunpack.c.l.b16 %v1165
        %v1933 = vunpack.c.h.b16 %v1165
        %v1934 = vunpack.c.l.b16 %v1166
        %v1935 = vunpack.c.h.b16 %v1166
        %v1936 = vunpack.c.l.b16 %v1167
        %v1937 = vunpack.c.h.b16 %v1167
        %v1938 = vunpack.c.l.b16 %v1168
        %v1939 = vunpack.c.h.b16 %v1168
        %v1940 = vunpack.c.l.b16 %v1169
        %v1941 = vunpack.c.h.b16 %v1169
        %v1942 = vunpack.c.l.b16 %v1170
        %v1943 = vunpack.c.h.b16 %v1170
        %v1944 = vunpack.c.l.b16 %v1171
        %v1945 = vunpack.c.h.b16 %v1171
        %v1946 = vunpack.c.l.b16 %v1172
        %v1947 = vunpack.c.h.b16 %v1172
        %v1948 = vunpack.c.l.b16 %v1173
        %v1949 = vunpack.c.h.b16 %v1173
        %v1950 = vunpack.c.l.b16 %v1174
        %v1951 = vunpack.c.h.b16 %v1174
        %v1952 = vunpack.c.l.b16 %v1175
        %v1953 = vunpack.c.h.b16 %v1175
        %v1954 = vunpack.c.l.b16 %v1176
        %v1955 = vunpack.c.h.b16 %v1176
        %v1956 = vunpack.c.l.b16 %v1177
        %v1957 = vunpack.c.h.b16 %v1177
        %v1958 = vunpack.c.l.b16 %v1178
        %v1959 = vunpack.c.h.b16 %v1178
        %v1960 = vunpack.c.l.b16 %v1179
        %v1961 = vunpack.c.h.b16 %v1179
        %v1962 = vunpack.c.l.b16 %v1180
        %v1963 = vunpack.c.h.b16 %v1180
        %v1964 = vunpack.c.l.b16 %v1181
        %v1965 = vunpack.c.h.b16 %v1181
        %v1966 = vunpack.c.l.b16 %v1182
        %v1967 = vunpack.c.h.b16 %v1182
        %v1968 = vunpack.c.l.b16 %v1183
        %v1969 = vunpack.c.h.b16 %v1183
        %v1970 = vunpack.c.l.b16 %v1184
        %v1971 = vunpack.c.h.b16 %v1184
        %v1972 = vunpack.c.l.b16 %v1185
        %v1973 = vunpack.c.h.b16 %v1185
        %v1974 = vunpack.c.l.b16 %v1186
        %v1975 = vunpack.c.h.b16 %v1186
        %v1976 = vunpack.c.l.b16 %v1187
        %v1977 = vunpack.c.h.b16 %v1187
        %v1978 = vunpack.c.l.b16 %v1188
        %v1979 = vunpack.c.h.b16 %v1188
        %v1980 = vunpack.c.l.b16 %v1189
        %v1981 = vunpack.c.h.b16 %v1189
        %v1982 = vunpack.c.l.b16 %v1190
        %v1983 = vunpack.c.h.b16 %v1190
        %v1984 = vunpack.c.l.b16 %v1191
        %v1985 = vunpack.c.h.b16 %v1191
        %v1986 = vunpack.c.l.b16 %v1192
        %v1987 = vunpack.c.h.b16 %v1192
        %v1988 = vunpack.c.l.b16 %v1193
        %v1989 = vunpack.c.h.b16 %v1193
        %v1990 = vunpack.c.l.b16 %v1194
        %v1991 = vunpack.c.h.b16 %v1194
        %v1992 = vunpack.c.l.b16 %v1195
        %v1993 = vunpack.c.h.b16 %v1195
        %v1994 = vunpack.c.l.b16 %v1196
        %v1995 = vunpack.c.h.b16 %v1196
        %v1996 = vunpack.c.l.b16 %v1197
        %v1997 = vunpack.c.h.b16 %v1197
        %v1998 = vunpack.c.l.b16 %v1198
        %v1999 = vunpack.c.h.b16 %v1198
        %v2000 = vunpack.c.l.b16 %v1199
        %v2001 = vunpack.c.h.b16 %v1199
        %v2002 = vunpack.c.l.b16 %v1200
        %v2003 = vunpack.c.h.b16 %v1200
        %v2004 = vunpack.c.l.b16 %v1201
        %v2005 = vunpack.c.h.b16 %v1201
        %v2006 = vunpack.c.l.b16 %v1202
        %v2007 = vunpack.c.h.b16 %v1202
        %v2008 = vunpack.c.l.b16 %v1203
        %v2009 = vunpack.c.h.b16 %v1203
        %v2010 = vunpack.c.l.b16 %v1204
        %v2011 = vunpack.c.h.b16 %v1204
        %v2012 = vunpack.c.l.b16 %v1205
        %v2013 = vunpack.c.h.b16 %v1205
        %v2014 = vunpack.c.l.b16 %v1206
        %v2015 = vunpack.c.h.b16 %v1206
        %v2016 = vunpack.c.l.b16 %v1207
        %v2017 = vunpack.c.h.b16 %v1207
        %v2018 = vunpack.c.l.b16 %v1208
        %v2019 = vunpack.c.h.b16 %v1208
        %v2020 = vunpack.c.l.b16 %v1209
        %v2021 = vunpack.c.h.b16 %v1209
        %v2022 = vunpack.c.l.b16 %v1210
        %v2023 = vunpack.c.h.b16 %v1210
        %v2024 = vunpack.c.l.b16 %v1211
        %v2025 = vunpack.c.h.b16 %v1211
        %v2026 = vunpack.c.l.b16 %v1212
        %v2027 = vunpack.c.h.b16 %v1212
        %v2028 = vunpack.c.l.b16 %v1213
        %v2029 = vunpack.c.h.b16 %v1213
        %v2030 = vunpack.c.l.b16 %v1214
        %v2031 = vunpack.c.h.b16 %v1214
        %v2032 = vunpack.c.l.b16 %v1215
        %v2033 = vunpack.c.h.b16 %v1215
        %v2034 = vunpack.c.l.b16 %v1216
        %v2035 = vunpack.c.h.b16 %v1216
        %v2036 = vunpack.c.l.b16 %v1217
        %v2037 = vunpack.c.h.b16 %v1217
        %v2038 = vunpack.c.l.b16 %v1218
        %v2039 = vunpack.c.h.b16 %v1218
        %v2040 = vunpack.c.l.b16 %v1219
        %v2041 = vunpack.c.h.b16 %v1219
        %v2042 = vunpack.c.l.b16 %v1220
        %v2043 = vunpack.c.h.b16 %v1220
        %v2044 = vunpack.c.l.b16 %v1221
        %v2045 = vunpack.c.h.b16 %v1221
        %v2046 = vunpack.c.l.b16 %v1222
        %v2047 = vunpack.c.h.b16 %v1222
        %v2048 = vunpack.c.l.b16 %v1223
        %v2049 = vunpack.c.h.b16 %v1223
        %v2050 = vunpack.c.l.b16 %v1224
        %v2051 = vunpack.c.h.b16 %v1224
        %v2052 = vunpack.c.l.b16 %v1225
        %v2053 = vunpack.c.h.b16 %v1225
        %v2054 = vunpack.c.l.b16 %v1226
        %v2055 = vunpack.c.h.b16 %v1226
        %v2056 = vunpack.c.l.b16 %v1227
        %v2057 = vunpack.c.h.b16 %v1227
        %v2058 = vunpack.c.l.b16 %v1228
        %v2059 = vunpack.c.h.b16 %v1228
        %v2060 = vunpack.c.l.b16 %v1229
        %v2061 = vunpack.c.h.b16 %v1229
        %v2062 = vunpack.c.l.b16 %v1230
        %v2063 = vunpack.c.h.b16 %v1230
        %v2064 = vunpack.c.l.b16 %v1231
        %v2065 = vunpack.c.h.b16 %v1231
        %v2066 = vunpack.c.l.b16 %v1232
        %v2067 = vunpack.c.h.b16 %v1232
        %v2068 = vunpack.c.l.b16 %v1233
        %v2069 = vunpack.c.h.b16 %v1233
        %v2070 = vunpack.c.l.b16 %v1234
        %v2071 = vunpack.c.h.b16 %v1234
        %v2072 = vunpack.c.l.b16 %v1235
        %v2073 = vunpack.c.h.b16 %v1235
        %v2074 = vunpack.c.l.b16 %v1236
        %v2075 = vunpack.c.h.b16 %v1236
        %v2076 = vunpack.c.l.b16 %v1237
        %v2077 = vunpack.c.h.b16 %v1237
        %v2078 = vunpack.c.l.b16 %v1238
        %v2079 = vunpack.c.h.b16 %v1238
        %v2080 = vunpack.c.l.b16 %v1239
        %v2081 = vunpack.c.h.b16 %v1239
        %v2082 = vunpack.c.l.b16 %v1240
        %v2083 = vunpack.c.h.b16 %v1240
        %v2084 = vunpack.c.l.b16 %v1241
        %v2085 = vunpack.c.h.b16 %v1241
        %v2086 = vunpack.c.l.b16 %v1242
        %v2087 = vunpack.c.h.b16 %v1242
        %v2088 = vunpack.c.l.b16 %v1243
        %v2089 = vunpack.c.h.b16 %v1243
        %v2090 = vunpack.c.l.b16 %v1244
        %v2091 = vunpack.c.h.b16 %v1244
        %v2092 = vunpack.c.l.b16 %v1245
        %v2093 = vunpack.c.h.b16 %v1245
        %v2094 = vunpack.c.l.b16 %v1246
        %v2095 = vunpack.c.h.b16 %v1246
        %v2096 = vunpack.c.l.b16 %v1247
        %v2097 = vunpack.c.h.b16 %v1247
        %v2098 = vunpack.c.l.b16 %v1248
        %v2099 = vunpack.c.h.b16 %v1248
        %v2100 = vunpack.c.l.b16 %v1249
        %v2101 = vunpack.c.h.b16 %v1249
        %v2102 = vunpack.c.l.b16 %v1250
        %v2103 = vunpack.c.h.b16 %v1250
        %v2104 = vunpack.c.l.b16 %v1251
        %v2105 = vunpack.c.h.b16 %v1251
        %v2106 = vunpack.c.l.b16 %v1252
        %v2107 = vunpack.c.h.b16 %v1252
        %v2108 = vunpack.c.l.b16 %v1253
        %v2109 = vunpack.c.h.b16 %v1253
        %v2110 = vunpack.c.l.b16 %v1254
        %v2111 = vunpack.c.h.b16 %v1254
        %v2112 = vunpack.c.l.b16 %v1255
        %v2113 = vunpack.c.h.b16 %v1255
        %v2114 = vunpack.c.l.b16 %v1256
        %v2115 = vunpack.c.h.b16 %v1256
        %v2116 = vunpack.c.l.b16 %v1257
        %v2117 = vunpack.c.h.b16 %v1257
        %v2118 = vunpack.c.l.b16 %v1258
        %v2119 = vunpack.c.h.b16 %v1258
        %v2120 = vunpack.c.l.b16 %v1259
        %v2121 = vunpack.c.h.b16 %v1259
        %v2122 = vunpack.c.l.b16 %v1260
        %v2123 = vunpack.c.h.b16 %v1260
        %v2124 = vunpack.c.l.b16 %v1261
        %v2125 = vunpack.c.h.b16 %v1261
        %v2126 = vunpack.c.l.b16 %v1262
        %v2127 = vunpack.c.h.b16 %v1262
        %v2128 = vunpack.c.l.b16 %v1263
        %v2129 = vunpack.c.h.b16 %v1263
        %v2130 = vunpack.c.l.b16 %v1264
        %v2131 = vunpack.c.h.b16 %v1264
        %v2132 = vunpack.c.l.b16 %v1265
        %v2133 = vunpack.c.h.b16 %v1265
        %v2134 = vunpack.c.l.b16 %v1266
        %v2135 = vunpack.c.h.b16 %v1266
        %v2136 = vunpack.c.l.b16 %v1267
        %v2137 = vunpack.c.h.b16 %v1267
        %v2138 = vunpack.c.l.b16 %v1268
        %v2139 = vunpack.c.h.b16 %v1268
        %v2140 = vunpack.c.l.b16 %v1269
        %v2141 = vunpack.c.h.b16 %v1269
        %v2142 = vunpack.c.l.b16 %v1270
        %v2143 = vunpack.c.h.b16 %v1270
        %v2144 = vunpack.c.l.b16 %v1271
        %v2145 = vunpack.c.h.b16 %v1271
        %v2146 = vunpack.c.l.b16 %v1272
        %v2147 = vunpack.c.h.b16 %v1272
        %v2148 = vunpack.c.l.b16 %v1273
        %v2149 = vunpack.c.h.b16 %v1273
        %v2150 = vunpack.c.l.b16 %v1274
        %v2151 = vunpack.c.h.b16 %v1274
        %v2152 = vunpack.c.l.b16 %v1275
        %v2153 = vunpack.c.h.b16 %v1275
        %v2154 = vunpack.c.l.b16 %v1276
        %v2155 = vunpack.c.h.b16 %v1276
        %v2156 = vunpack.c.l.b16 %v1277
        %v2157 = vunpack.c.h.b16 %v1277
        %v2158 = vunpack.c.l.b16 %v1278
        %v2159 = vunpack.c.h.b16 %v1278
        %v2160 = vunpack.c.l.b16 %v1279
        %v2161 = vunpack.c.h.b16 %v1279
        %v2162 = vunpack.c.l.b16 %v1280
        %v2163 = vunpack.c.h.b16 %v1280
        %v2164 = vunpack.c.l.b16 %v1281
        %v2165 = vunpack.c.h.b16 %v1281
        %v2166 = vunpack.c.l.b16 %v1282
        %v2167 = vunpack.c.h.b16 %v1282
        %v2168 = vunpack.c.l.b16 %v1283
        %v2169 = vunpack.c.h.b16 %v1283
        %v2170 = vunpack.c.l.b16 %v1284
        %v2171 = vunpack.c.h.b16 %v1284
        %v2172 = vunpack.c.l.b16 %v1285
        %v2173 = vunpack.c.h.b16 %v1285
        %v2174 = vunpack.c.l.b16 %v1286
        %v2175 = vunpack.c.h.b16 %v1286
        %v2176 = vunpack.c.l.b16 %v1287
        %v2177 = vunpack.c.h.b16 %v1287
        %v2178 = vunpack.c.l.b16 %v1288
        %v2179 = vunpack.c.h.b16 %v1288
        %v2180 = vunpack.c.l.b16 %v1289
        %v2181 = vunpack.c.h.b16 %v1289
        %v2182 = vunpack.c.l.b16 %v1290
        %v2183 = vunpack.c.h.b16 %v1290
        %v2184 = vunpack.c.l.b16 %v1291
        %v2185 = vunpack.c.h.b16 %v1291
        %v2186 = vunpack.c.l.b16 %v1292
        %v2187 = vunpack.c.h.b16 %v1292
        %v2188 = vunpack.c.l.b16 %v1293
        %v2189 = vunpack.c.h.b16 %v1293
        %v2190 = vpack.c.b16 %v1680, %v1678
        %v2191 = vpack.c.b16 %v1681, %v1679
        %v2192 = vpack.c.b16 %v1684, %v1682
        %v2193 = vpack.c.b16 %v1685, %v1683
        %v2194 = vpack.c.b16 %v1688, %v1686
        %v2195 = vpack.c.b16 %v1689, %v1687
        %v2196 = vpack.c.b16 %v1692, %v1690
        %v2197 = vpack.c.b16 %v1693, %v1691
        %v2198 = vpack.c.b16 %v1696, %v1694
        %v2199 = vpack.c.b16 %v1697, %v1695
        %v2200 = vpack.c.b16 %v1700, %v1698
        %v2201 = vpack.c.b16 %v1701, %v1699
        %v2202 = vpack.c.b16 %v1704, %v1702
        %v2203 = vpack.c.b16 %v1705, %v1703
        %v2204 = vpack.c.b16 %v1708, %v1706
        %v2205 = vpack.c.b16 %v1709, %v1707
        %v2206 = vpack.c.b16 %v1712, %v1710
        %v2207 = vpack.c.b16 %v1713, %v1711
        %v2208 = vpack.c.b16 %v1716, %v1714
        %v2209 = vpack.c.b16 %v1717, %v1715
        %v2210 = vpack.c.b16 %v1720, %v1718
        %v2211 = vpack.c.b16 %v1721, %v1719
        %v2212 = vpack.c.b16 %v1724, %v1722
        %v2213 = vpack.c.b16 %v1725, %v1723
        %v2214 = vpack.c.b16 %v1728, %v1726
        %v2215 = vpack.c.b16 %v1729, %v1727
        %v2216 = vpack.c.b16 %v1732, %v1730
        %v2217 = vpack.c.b16 %v1733, %v1731
        %v2218 = vpack.c.b16 %v1736, %v1734
        %v2219 = vpack.c.b16 %v1737, %v1735
        %v2220 = vpack.c.b16 %v1740, %v1738
        %v2221 = vpack.c.b16 %v1741, %v1739
        %v2222 = vpack.c.b16 %v1744, %v1742
        %v2223 = vpack.c.b16 %v1745, %v1743
        %v2224 = vpack.c.b16 %v1748, %v1746
        %v2225 = vpack.c.b16 %v1749, %v1747
        %v2226 = vpack.c.b16 %v1752, %v1750
        %v2227 = vpack.c.b16 %v1753, %v1751
        %v2228 = vpack.c.b16 %v1756, %v1754
        %v2229 = vpack.c.b16 %v1757, %v1755
        %v2230 = vpack.c.b16 %v1760, %v1758
        %v2231 = vpack.c.b16 %v1761, %v1759
        %v2232 = vpack.c.b16 %v1764, %v1762
        %v2233 = vpack.c.b16 %v1765, %v1763
        %v2234 = vpack.c.b16 %v1768, %v1766
        %v2235 = vpack.c.b16 %v1769, %v1767
        %v2236 = vpack.c.b16 %v1772, %v1770
        %v2237 = vpack.c.b16 %v1773, %v1771
        %v2238 = vpack.c.b16 %v1776, %v1774
        %v2239 = vpack.c.b16 %v1777, %v1775
        %v2240 = vpack.c.b16 %v1780, %v1778
        %v2241 = vpack.c.b16 %v1781, %v1779
        %v2242 = vpack.c.b16 %v1784, %v1782
        %v2243 = vpack.c.b16 %v1785, %v1783
        %v2244 = vpack.c.b16 %v1788, %v1786
        %v2245 = vpack.c.b16 %v1789, %v1787
        %v2246 = vpack.c.b16 %v1792, %v1790
        %v2247 = vpack.c.b16 %v1793, %v1791
        %v2248 = vpack.c.b16 %v1796, %v1794
        %v2249 = vpack.c.b16 %v1797, %v1795
        %v2250 = vpack.c.b16 %v1800, %v1798
        %v2251 = vpack.c.b16 %v1801, %v1799
        %v2252 = vpack.c.b16 %v1804, %v1802
        %v2253 = vpack.c.b16 %v1805, %v1803
        %v2254 = vpack.c.b16 %v1808, %v1806
        %v2255 = vpack.c.b16 %v1809, %v1807
        %v2256 = vpack.c.b16 %v1812, %v1810
        %v2257 = vpack.c.b16 %v1813, %v1811
        %v2258 = vpack.c.b16 %v1816, %v1814
        %v2259 = vpack.c.b16 %v1817, %v1815
        %v2260 = vpack.c.b16 %v1820, %v1818
        %v2261 = vpack.c.b16 %v1821, %v1819
        %v2262 = vpack.c.b16 %v1824, %v1822
        %v2263 = vpack.c.b16 %v1825, %v1823
        %v2264 = vpack.c.b16 %v1828, %v1826
        %v2265 = vpack.c.b16 %v1829, %v1827
        %v2266 = vpack.c.b16 %v1832, %v1830
        %v2267 = vpack.c.b16 %v1833, %v1831
        %v2268 = vpack.c.b16 %v1836, %v1834
        %v2269 = vpack.c.b16 %v1837, %v1835
        %v2270 = vpack.c.b16 %v1840, %v1838
        %v2271 = vpack.c.b16 %v1841, %v1839
        %v2272 = vpack.c.b16 %v1844, %v1842
        %v2273 = vpack.c.b16 %v1845, %v1843
        %v2274 = vpack.c.b16 %v1848, %v1846
        %v2275 = vpack.c.b16 %v1849, %v1847
        %v2276 = vpack.c.b16 %v1852, %v1850
        %v2277 = vpack.c.b16 %v1853, %v1851
        %v2278 = vpack.c.b16 %v1856, %v1854
        %v2279 = vpack.c.b16 %v1857, %v1855
        %v2280 = vpack.c.b16 %v1860, %v1858
        %v2281 = vpack.c.b16 %v1861, %v1859
        %v2282 = vpack.c.b16 %v1864, %v1862
        %v2283 = vpack.c.b16 %v1865, %v1863
        %v2284 = vpack.c.b16 %v1868, %v1866
        %v2285 = vpack.c.b16 %v1869, %v1867
        %v2286 = vpack.c.b16 %v1872, %v1870
        %v2287 = vpack.c.b16 %v1873, %v1871
        %v2288 = vpack.c.b16 %v1876, %v1874
        %v2289 = vpack.c.b16 %v1877, %v1875
        %v2290 = vpack.c.b16 %v1880, %v1878
        %v2291 = vpack.c.b16 %v1881, %v1879
        %v2292 = vpack.c.b16 %v1884, %v1882
        %v2293 = vpack.c.b16 %v1885, %v1883
        %v2294 = vpack.c.b16 %v1888, %v1886
        %v2295 = vpack.c.b16 %v1889, %v1887
        %v2296 = vpack.c.b16 %v1892, %v1890
        %v2297 = vpack.c.b16 %v1893, %v1891
        %v2298 = vpack.c.b16 %v1896, %v1894
        %v2299 = vpack.c.b16 %v1897, %v1895
        %v2300 = vpack.c.b16 %v1900, %v1898
        %v2301 = vpack.c.b16 %v1901, %v1899
        %v2302 = vpack.c.b16 %v1904, %v1902
        %v2303 = vpack.c.b16 %v1905, %v1903
        %v2304 = vpack.c.b16 %v1908, %v1906
        %v2305 = vpack.c.b16 %v1909, %v1907
        %v2306 = vpack.c.b16 %v1912, %v1910
        %v2307 = vpack.c.b16 %v1913, %v1911
        %v2308 = vpack.c.b16 %v1916, %v1914
        %v2309 = vpack.c.b16 %v1917, %v1915
        %v2310 = vpack.c.b16 %v1920, %v1918
        %v2311 = vpack.c.b16 %v1921, %v1919
        %v2312 = vpack.c.b16 %v1924, %v1922
        %v2313 = vpack.c.b16 %v1925, %v1923
        %v2314 = vpack.c.b16 %v1928, %v1926
        %v2315 = vpack.c.b16 %v1929, %v1927
        %v2316 = vpack.c.b16 %v1932, %v1930
        %v2317 = vpack.c.b16 %v1933, %v1931
        %v2318 = vpack.c.b16 %v1936, %v1934
        %v2319 = vpack.c.b16 %v1937, %v1935
        %v2320 = vpack.c.b16 %v1940, %v1938
        %v2321 = vpack.c.b16 %v1941, %v1939
        %v2322 = vpack.c.b16 %v1944, %v1942
        %v2323 = vpack.c.b16 %v1945, %v1943
        %v2324 = vpack.c.b16 %v1948, %v1946
        %v2325 = vpack.c.b16 %v1949, %v1947
        %v2326 = vpack.c.b16 %v1952, %v1950
        %v2327 = vpack.c.b16 %v1953, %v1951
        %v2328 = vpack.c.b16 %v1956, %v1954
        %v2329 = vpack.c.b16 %v1957, %v1955
        %v2330 = vpack.c.b16 %v1960, %v1958
        %v2331 = vpack.c.b16 %v1961, %v1959
        %v2332 = vpack.c.b16 %v1964, %v1962
        %v2333 = vpack.c.b16 %v1965, %v1963
        %v2334 = vpack.c.b16 %v1968, %v1966
        %v2335 = vpack.c.b16 %v1969, %v1967
        %v2336 = vpack.c.b16 %v1972, %v1970
        %v2337 = vpack.c.b16 %v1973, %v1971
        %v2338 = vpack.c.b16 %v1976, %v1974
        %v2339 = vpack.c.b16 %v1977, %v1975
        %v2340 = vpack.c.b16 %v1980, %v1978
        %v2341 = vpack.c.b16 %v1981, %v1979
        %v2342 = vpack.c.b16 %v1984, %v1982
        %v2343 = vpack.c.b16 %v1985, %v1983
        %v2344 = vpack.c.b16 %v1988, %v1986
        %v2345 = vpack.c.b16 %v1989, %v1987
        %v2346 = vpack.c.b16 %v1992, %v1990
        %v2347 = vpack.c.b16 %v1993, %v1991
        %v2348 = vpack.c.b16 %v1996, %v1994
        %v2349 = vpack.c.b16 %v1997, %v1995
        %v2350 = vpack.c.b16 %v2000, %v1998
        %v2351 = vpack.c.b16 %v2001, %v1999
        %v2352 = vpack.c.b16 %v2004, %v2002
        %v2353 = vpack.c.b16 %v2005, %v2003
        %v2354 = vpack.c.b16 %v2008, %v2006
        %v2355 = vpack.c.b16 %v2009, %v2007
        %v2356 = vpack.c.b16 %v2012, %v2010
        %v2357 = vpack.c.b16 %v2013, %v2011
        %v2358 = vpack.c.b16 %v2016, %v2014
        %v2359 = vpack.c.b16 %v2017, %v2015
        %v2360 = vpack.c.b16 %v2020, %v2018
        %v2361 = vpack.c.b16 %v2021, %v2019
        %v2362 = vpack.c.b16 %v2024, %v2022
        %v2363 = vpack.c.b16 %v2025, %v2023
        %v2364 = vpack.c.b16 %v2028, %v2026
        %v2365 = vpack.c.b16 %v2029, %v2027
        %v2366 = vpack.c.b16 %v2032, %v2030
        %v2367 = vpack.c.b16 %v2033, %v2031
        %v2368 = vpack.c.b16 %v2036, %v2034
        %v2369 = vpack.c.b16 %v2037, %v2035
        %v2370 = vpack.c.b16 %v2040, %v2038
        %v2371 = vpack.c.b16 %v2041, %v2039
        %v2372 = vpack.c.b16 %v2044, %v2042
        %v2373 = vpack.c.b16 %v2045, %v2043
        %v2374 = vpack.c.b16 %v2048, %v2046
        %v2375 = vpack.c.b16 %v2049, %v2047
        %v2376 = vpack.c.b16 %v2052, %v2050
        %v2377 = vpack.c.b16 %v2053, %v2051
        %v2378 = vpack.c.b16 %v2056, %v2054
        %v2379 = vpack.c.b16 %v2057, %v2055
        %v2380 = vpack.c.b16 %v2060, %v2058
        %v2381 = vpack.c.b16 %v2061, %v2059
        %v2382 = vpack.c.b16 %v2064, %v2062
        %v2383 = vpack.c.b16 %v2065, %v2063
        %v2384 = vpack.c.b16 %v2068, %v2066
        %v2385 = vpack.c.b16 %v2069, %v2067
        %v2386 = vpack.c.b16 %v2072, %v2070
        %v2387 = vpack.c.b16 %v2073, %v2071
        %v2388 = vpack.c.b16 %v2076, %v2074
        %v2389 = vpack.c.b16 %v2077, %v2075
        %v2390 = vpack.c.b16 %v2080, %v2078
        %v2391 = vpack.c.b16 %v2081, %v2079
        %v2392 = vpack.c.b16 %v2084, %v2082
        %v2393 = vpack.c.b16 %v2085, %v2083
        %v2394 = vpack.c.b16 %v2088, %v2086
        %v2395 = vpack.c.b16 %v2089, %v2087
        %v2396 = vpack.c.b16 %v2092, %v2090
        %v2397 = vpack.c.b16 %v2093, %v2091
        %v2398 = vpack.c.b16 %v2096, %v2094
        %v2399 = vpack.c.b16 %v2097, %v2095
        %v2400 = vpack.c.b16 %v2100, %v2098
        %v2401 = vpack.c.b16 %v2101, %v2099
        %v2402 = vpack.c.b16 %v2104, %v2102
        %v2403 = vpack.c.b16 %v2105, %v2103
        %v2404 = vpack.c.b16 %v2108, %v2106
        %v2405 = vpack.c.b16 %v2109, %v2107
        %v2406 = vpack.c.b16 %v2112, %v2110
        %v2407 = vpack.c.b16 %v2113, %v2111
        %v2408 = vpack.c.b16 %v2116, %v2114
        %v2409 = vpack.c.b16 %v2117, %v2115
        %v2410 = vpack.c.b16 %v2120, %v2118
        %v2411 = vpack.c.b16 %v2121, %v2119
        %v2412 = vpack.c.b16 %v2124, %v2122
        %v2413 = vpack.c.b16 %v2125, %v2123
        %v2414 = vpack.c.b16 %v2128, %v2126
        %v2415 = vpack.c.b16 %v2129, %v2127
        %v2416 = vpack.c.b16 %v2132, %v2130
        %v2417 = vpack.c.b16 %v2133, %v2131
        %v2418 = vpack.c.b16 %v2136, %v2134
        %v2419 = vpack.c.b16 %v2137, %v2135
        %v2420 = vpack.c.b16 %v2140, %v2138
        %v2421 = vpack.c.b16 %v2141, %v2139
        %v2422 = vpack.c.b16 %v2144, %v2142
        %v2423 = vpack.c.b16 %v2145, %v2143
        %v2424 = vpack.c.b16 %v2148, %v2146
        %v2425 = vpack.c.b16 %v2149, %v2147
        %v2426 = vpack.c.b16 %v2152, %v2150
        %v2427 = vpack.c.b16 %v2153, %v2151
        %v2428 = vpack.c.b16 %v2156, %v2154
        %v2429 = vpack.c.b16 %v2157, %v2155
        %v2430 = vpack.c.b16 %v2160, %v2158
        %v2431 = vpack.c.b16 %v2161, %v2159
        %v2432 = vpack.c.b16 %v2164, %v2162
        %v2433 = vpack.c.b16 %v2165, %v2163
        %v2434 = vpack.c.b16 %v2168, %v2166
        %v2435 = vpack.c.b16 %v2169, %v2167
        %v2436 = vpack.c.b16 %v2172, %v2170
        %v2437 = vpack.c.b16 %v2173, %v2171
        %v2438 = vpack.c.b16 %v2176, %v2174
        %v2439 = vpack.c.b16 %v2177, %v2175
        %v2440 = vpack.c.b16 %v2180, %v2178
        %v2441 = vpack.c.b16 %v2181, %v2179
        %v2442 = vpack.c.b16 %v2184, %v2182
        %v2443 = vpack.c.b16 %v2185, %v2183
        %v2444 = vpack.c.b16 %v2188, %v2186
        %v2445 = vpack.c.b16 %v2189, %v2187
        %2702 = vmatprep.subr.bf16.mxu0 %v2205
        %2703 = vmatpush1.bf16.msra.mxu0 %v2204
        %2704 = vmatprep.subr.bf16.mxu0 %v2203
        %2705 = vmatpush1.bf16.msra.mxu0 %v2202
        %2706 = vmatprep.subr.bf16.mxu0 %v2201
        %2707 = vmatpush1.bf16.msra.mxu0 %v2200
        %2708 = vmatprep.subr.bf16.mxu0 %v2199
        %2709 = vmatpush1.bf16.msra.mxu0 %v2198
        %2710 = vmatprep.subr.bf16.mxu0 %v2197
        %2711 = vmatpush1.bf16.msra.mxu0 %v2196
        %2712 = vmatprep.subr.bf16.mxu0 %v2195
        %2713 = vmatpush1.bf16.msra.mxu0 %v2194
        %2714 = vmatprep.subr.bf16.mxu0 %v2193
        %2715 = vmatpush1.bf16.msra.mxu0 %v2192
        %2716 = vmatprep.subr.bf16.mxu0 %v2191
        %2717 = vmatpush1.bf16.msra.mxu0 %v2190
        %2718 = vmatprep.subr.bf16.mxu0 %v2221
        %2719 = vmatpush2.bf16.msra.mxu0 %v2220
        %2720 = vmatprep.subr.bf16.mxu0 %v2219
        %2721 = vmatpush2.bf16.msra.mxu0 %v2218
        %2722 = vmatprep.subr.bf16.mxu0 %v2217
        %2723 = vmatpush2.bf16.msra.mxu0 %v2216
        %2724 = vmatprep.subr.bf16.mxu0 %v2215
        %2725 = vmatpush2.bf16.msra.mxu0 %v2214
        %2726 = vmatprep.subr.bf16.mxu0 %v2213
        %2727 = vmatpush2.bf16.msra.mxu0 %v2212
        %2728 = vmatprep.subr.bf16.mxu0 %v2211
        %2729 = vmatpush2.bf16.msra.mxu0 %v2210
        %2730 = vmatprep.subr.bf16.mxu0 %v2209
        %2731 = vmatpush2.bf16.msra.mxu0 %v2208
        %2732 = vmatprep.subr.bf16.mxu0 %v2207
        %2733 = vmatpush2.bf16.msra.mxu0 %v2206
        %2734 = vmatprep.mubr.bf16.mxu0 %v1345
        %2735 = vmatmul.mubr.bf16.gmra.mxu0 %v1331
        %v2736 = vpop.f32.mrf.mxu0
        %v2737 = vadd.f32 %v1299, %v2736
        %v2738 = vpop.f32.mrf.mxu0
        %v2739 = vadd.f32 %v1303, %v2738
        %v2740 = vpop.f32.mrf.mxu0
        %v2741 = vpop.f32.mrf.mxu0
        %2742 = vdwg.mxu0
        %2743 = vmatprep.subr.bf16.mxu0 %v2237
        %2744 = vmatpush1.bf16.msra.mxu0 %v2236
        %2745 = vmatprep.subr.bf16.mxu0 %v2235
        %2746 = vmatpush1.bf16.msra.mxu0 %v2234
        %2747 = vmatprep.subr.bf16.mxu0 %v2233
        %2748 = vmatpush1.bf16.msra.mxu0 %v2232
        %2749 = vmatprep.subr.bf16.mxu0 %v2231
        %2750 = vmatpush1.bf16.msra.mxu0 %v2230
        %2751 = vmatprep.subr.bf16.mxu0 %v2229
        %2752 = vmatpush1.bf16.msra.mxu0 %v2228
        %2753 = vmatprep.subr.bf16.mxu0 %v2227
        %2754 = vmatpush1.bf16.msra.mxu0 %v2226
        %2755 = vmatprep.subr.bf16.mxu0 %v2225
        %2756 = vmatpush1.bf16.msra.mxu0 %v2224
        %2757 = vmatprep.subr.bf16.mxu0 %v2223
        %2758 = vmatpush1.bf16.msra.mxu0 %v2222
        %2759 = vmatprep.subr.bf16.mxu0 %v2253
        %2760 = vmatpush2.bf16.msra.mxu0 %v2252
        %2761 = vmatprep.subr.bf16.mxu0 %v2251
        %2762 = vmatpush2.bf16.msra.mxu0 %v2250
        %2763 = vmatprep.subr.bf16.mxu0 %v2249
        %2764 = vmatpush2.bf16.msra.mxu0 %v2248
        %2765 = vmatprep.subr.bf16.mxu0 %v2247
        %2766 = vmatpush2.bf16.msra.mxu0 %v2246
        %2767 = vmatprep.subr.bf16.mxu0 %v2245
        %2768 = vmatpush2.bf16.msra.mxu0 %v2244
        %2769 = vmatprep.subr.bf16.mxu0 %v2243
        %2770 = vmatpush2.bf16.msra.mxu0 %v2242
        %2771 = vmatprep.subr.bf16.mxu0 %v2241
        %2772 = vmatpush2.bf16.msra.mxu0 %v2240
        %2773 = vmatprep.subr.bf16.mxu0 %v2239
        %2774 = vmatpush2.bf16.msra.mxu0 %v2238
        %2775 = vmatprep.mubr.bf16.mxu0 %v1355
        %2776 = vmatmul.mubr.bf16.gmra.mxu0 %v1353
        %v2777 = vpop.f32.mrf.mxu0
        %v2778 = vadd.f32 %v2737, %v2777
        %v2779 = vpop.f32.mrf.mxu0
        %v2780 = vadd.f32 %v2739, %v2779
        %v2781 = vpop.f32.mrf.mxu0
        %v2782 = vpop.f32.mrf.mxu0
        %2783 = vdwg.mxu0
        %2784 = vmatprep.subr.bf16.mxu0 %v2269
        %2785 = vmatpush1.bf16.msra.mxu0 %v2268
        %2786 = vmatprep.subr.bf16.mxu0 %v2267
        %2787 = vmatpush1.bf16.msra.mxu0 %v2266
        %2788 = vmatprep.subr.bf16.mxu0 %v2265
        %2789 = vmatpush1.bf16.msra.mxu0 %v2264
        %2790 = vmatprep.subr.bf16.mxu0 %v2263
        %2791 = vmatpush1.bf16.msra.mxu0 %v2262
        %2792 = vmatprep.subr.bf16.mxu0 %v2261
        %2793 = vmatpush1.bf16.msra.mxu0 %v2260
        %2794 = vmatprep.subr.bf16.mxu0 %v2259
        %2795 = vmatpush1.bf16.msra.mxu0 %v2258
        %2796 = vmatprep.subr.bf16.mxu0 %v2257
        %2797 = vmatpush1.bf16.msra.mxu0 %v2256
        %2798 = vmatprep.subr.bf16.mxu0 %v2255
        %2799 = vmatpush1.bf16.msra.mxu0 %v2254
        %2800 = vmatprep.subr.bf16.mxu0 %v2285
        %2801 = vmatpush2.bf16.msra.mxu0 %v2284
        %2802 = vmatprep.subr.bf16.mxu0 %v2283
        %2803 = vmatpush2.bf16.msra.mxu0 %v2282
        %2804 = vmatprep.subr.bf16.mxu0 %v2281
        %2805 = vmatpush2.bf16.msra.mxu0 %v2280
        %2806 = vmatprep.subr.bf16.mxu0 %v2279
        %2807 = vmatpush2.bf16.msra.mxu0 %v2278
        %2808 = vmatprep.subr.bf16.mxu0 %v2277
        %2809 = vmatpush2.bf16.msra.mxu0 %v2276
        %2810 = vmatprep.subr.bf16.mxu0 %v2275
        %2811 = vmatpush2.bf16.msra.mxu0 %v2274
        %2812 = vmatprep.subr.bf16.mxu0 %v2273
        %2813 = vmatpush2.bf16.msra.mxu0 %v2272
        %2814 = vmatprep.subr.bf16.mxu0 %v2271
        %2815 = vmatpush2.bf16.msra.mxu0 %v2270
        %2816 = vmatprep.mubr.bf16.mxu0 %v1352
        %2817 = vmatmul.mubr.bf16.gmra.mxu0 %v1338
        %v2818 = vpop.f32.mrf.mxu0
        %v2819 = vadd.f32 %v2778, %v2818
        %v2820 = vpop.f32.mrf.mxu0
        %v2821 = vadd.f32 %v2780, %v2820
        %v2822 = vpop.f32.mrf.mxu0
        %v2823 = vpop.f32.mrf.mxu0
        %2824 = vdwg.mxu0
        %2825 = vmatprep.subr.bf16.mxu0 %v2301
        %2826 = vmatpush1.bf16.msra.mxu0 %v2300
        %2827 = vmatprep.subr.bf16.mxu0 %v2299
        %2828 = vmatpush1.bf16.msra.mxu0 %v2298
        %2829 = vmatprep.subr.bf16.mxu0 %v2297
        %2830 = vmatpush1.bf16.msra.mxu0 %v2296
        %2831 = vmatprep.subr.bf16.mxu0 %v2295
        %2832 = vmatpush1.bf16.msra.mxu0 %v2294
        %2833 = vmatprep.subr.bf16.mxu0 %v2293
        %2834 = vmatpush1.bf16.msra.mxu0 %v2292
        %2835 = vmatprep.subr.bf16.mxu0 %v2291
        %2836 = vmatpush1.bf16.msra.mxu0 %v2290
        %2837 = vmatprep.subr.bf16.mxu0 %v2289
        %2838 = vmatpush1.bf16.msra.mxu0 %v2288
        %2839 = vmatprep.subr.bf16.mxu0 %v2287
        %2840 = vmatpush1.bf16.msra.mxu0 %v2286
        %2841 = vmatprep.subr.bf16.mxu0 %v2317
        %2842 = vmatpush2.bf16.msra.mxu0 %v2316
        %2843 = vmatprep.subr.bf16.mxu0 %v2315
        %2844 = vmatpush2.bf16.msra.mxu0 %v2314
        %2845 = vmatprep.subr.bf16.mxu0 %v2313
        %2846 = vmatpush2.bf16.msra.mxu0 %v2312
        %2847 = vmatprep.subr.bf16.mxu0 %v2311
        %2848 = vmatpush2.bf16.msra.mxu0 %v2310
        %2849 = vmatprep.subr.bf16.mxu0 %v2309
        %2850 = vmatpush2.bf16.msra.mxu0 %v2308
        %2851 = vmatprep.subr.bf16.mxu0 %v2307
        %2852 = vmatpush2.bf16.msra.mxu0 %v2306
        %2853 = vmatprep.subr.bf16.mxu0 %v2305
        %2854 = vmatpush2.bf16.msra.mxu0 %v2304
        %2855 = vmatprep.subr.bf16.mxu0 %v2303
        %2856 = vmatpush2.bf16.msra.mxu0 %v2302
        %2857 = vmatprep.mubr.bf16.mxu0 %v1356
        %2858 = vmatmul.mubr.bf16.gmra.mxu0 %v1354
        %v2859 = vpop.f32.mrf.mxu0
        %v2860 = vadd.f32 %v2819, %v2859
        %v2861 = vpop.f32.mrf.mxu0
        %v2862 = vadd.f32 %v2821, %v2861
        %v2863 = vpop.f32.mrf.mxu0
        %v2864 = vpop.f32.mrf.mxu0
        %2865 = vdwg.mxu0
        %2866 = vmatprep.subr.bf16.mxu0 %v2333
        %2867 = vmatpush1.bf16.msra.mxu0 %v2332
        %2868 = vmatprep.subr.bf16.mxu0 %v2331
        %2869 = vmatpush1.bf16.msra.mxu0 %v2330
        %2870 = vmatprep.subr.bf16.mxu0 %v2329
        %2871 = vmatpush1.bf16.msra.mxu0 %v2328
        %2872 = vmatprep.subr.bf16.mxu0 %v2327
        %2873 = vmatpush1.bf16.msra.mxu0 %v2326
        %2874 = vmatprep.subr.bf16.mxu0 %v2325
        %2875 = vmatpush1.bf16.msra.mxu0 %v2324
        %2876 = vmatprep.subr.bf16.mxu0 %v2323
        %2877 = vmatpush1.bf16.msra.mxu0 %v2322
        %2878 = vmatprep.subr.bf16.mxu0 %v2321
        %2879 = vmatpush1.bf16.msra.mxu0 %v2320
        %2880 = vmatprep.subr.bf16.mxu0 %v2319
        %2881 = vmatpush1.bf16.msra.mxu0 %v2318
        %2882 = vmatprep.subr.bf16.mxu0 %v2349
        %2883 = vmatpush2.bf16.msra.mxu0 %v2348
        %2884 = vmatprep.subr.bf16.mxu0 %v2347
        %2885 = vmatpush2.bf16.msra.mxu0 %v2346
        %2886 = vmatprep.subr.bf16.mxu0 %v2345
        %2887 = vmatpush2.bf16.msra.mxu0 %v2344
        %2888 = vmatprep.subr.bf16.mxu0 %v2343
        %2889 = vmatpush2.bf16.msra.mxu0 %v2342
        %2890 = vmatprep.subr.bf16.mxu0 %v2341
        %2891 = vmatpush2.bf16.msra.mxu0 %v2340
        %2892 = vmatprep.subr.bf16.mxu0 %v2339
        %2893 = vmatpush2.bf16.msra.mxu0 %v2338
        %2894 = vmatprep.subr.bf16.mxu0 %v2337
        %2895 = vmatpush2.bf16.msra.mxu0 %v2336
        %2896 = vmatprep.subr.bf16.mxu0 %v2335
        %2897 = vmatpush2.bf16.msra.mxu0 %v2334
        %2898 = vmatprep.mubr.bf16.mxu0 %v1394
        %2899 = vmatmul.mubr.bf16.gmra.mxu0 %v1380
        %v2900 = vpop.f32.mrf.mxu0
        %v2901 = vadd.f32 %v2860, %v2900
        %v2902 = vpop.f32.mrf.mxu0
        %v2903 = vadd.f32 %v2862, %v2902
        %v2904 = vpop.f32.mrf.mxu0
        %v2905 = vpop.f32.mrf.mxu0
        %2906 = vdwg.mxu0
        %2907 = vmatprep.subr.bf16.mxu0 %v2365
        %2908 = vmatpush1.bf16.msra.mxu0 %v2364
        %2909 = vmatprep.subr.bf16.mxu0 %v2363
        %2910 = vmatpush1.bf16.msra.mxu0 %v2362
        %2911 = vmatprep.subr.bf16.mxu0 %v2361
        %2912 = vmatpush1.bf16.msra.mxu0 %v2360
        %2913 = vmatprep.subr.bf16.mxu0 %v2359
        %2914 = vmatpush1.bf16.msra.mxu0 %v2358
        %2915 = vmatprep.subr.bf16.mxu0 %v2357
        %2916 = vmatpush1.bf16.msra.mxu0 %v2356
        %2917 = vmatprep.subr.bf16.mxu0 %v2355
        %2918 = vmatpush1.bf16.msra.mxu0 %v2354
        %2919 = vmatprep.subr.bf16.mxu0 %v2353
        %2920 = vmatpush1.bf16.msra.mxu0 %v2352
        %2921 = vmatprep.subr.bf16.mxu0 %v2351
        %2922 = vmatpush1.bf16.msra.mxu0 %v2350
        %2923 = vmatprep.subr.bf16.mxu0 %v2381
        %2924 = vmatpush2.bf16.msra.mxu0 %v2380
        %2925 = vmatprep.subr.bf16.mxu0 %v2379
        %2926 = vmatpush2.bf16.msra.mxu0 %v2378
        %2927 = vmatprep.subr.bf16.mxu0 %v2377
        %2928 = vmatpush2.bf16.msra.mxu0 %v2376
        %2929 = vmatprep.subr.bf16.mxu0 %v2375
        %2930 = vmatpush2.bf16.msra.mxu0 %v2374
        %2931 = vmatprep.subr.bf16.mxu0 %v2373
        %2932 = vmatpush2.bf16.msra.mxu0 %v2372
        %2933 = vmatprep.subr.bf16.mxu0 %v2371
        %2934 = vmatpush2.bf16.msra.mxu0 %v2370
        %2935 = vmatprep.subr.bf16.mxu0 %v2369
        %2936 = vmatpush2.bf16.msra.mxu0 %v2368
        %2937 = vmatprep.subr.bf16.mxu0 %v2367
        %2938 = vmatpush2.bf16.msra.mxu0 %v2366
        %2939 = vmatprep.mubr.bf16.mxu0 %v1404
        %2940 = vmatmul.mubr.bf16.gmra.mxu0 %v1402
        %v2941 = vpop.f32.mrf.mxu0
        %v2942 = vadd.f32 %v2901, %v2941
        %v2943 = vpop.f32.mrf.mxu0
        %v2944 = vadd.f32 %v2903, %v2943
        %v2945 = vpop.f32.mrf.mxu0
        %v2946 = vpop.f32.mrf.mxu0
        %2947 = vdwg.mxu0
        %2948 = vmatprep.subr.bf16.mxu0 %v2397
        %2949 = vmatpush1.bf16.msra.mxu0 %v2396
        %2950 = vmatprep.subr.bf16.mxu0 %v2395
        %2951 = vmatpush1.bf16.msra.mxu0 %v2394
        %2952 = vmatprep.subr.bf16.mxu0 %v2393
        %2953 = vmatpush1.bf16.msra.mxu0 %v2392
        %2954 = vmatprep.subr.bf16.mxu0 %v2391
        %2955 = vmatpush1.bf16.msra.mxu0 %v2390
        %2956 = vmatprep.subr.bf16.mxu0 %v2389
        %2957 = vmatpush1.bf16.msra.mxu0 %v2388
        %2958 = vmatprep.subr.bf16.mxu0 %v2387
        %2959 = vmatpush1.bf16.msra.mxu0 %v2386
        %2960 = vmatprep.subr.bf16.mxu0 %v2385
        %2961 = vmatpush1.bf16.msra.mxu0 %v2384
        %2962 = vmatprep.subr.bf16.mxu0 %v2383
        %2963 = vmatpush1.bf16.msra.mxu0 %v2382
        %2964 = vmatprep.subr.bf16.mxu0 %v2413
        %2965 = vmatpush2.bf16.msra.mxu0 %v2412
        %2966 = vmatprep.subr.bf16.mxu0 %v2411
        %2967 = vmatpush2.bf16.msra.mxu0 %v2410
        %2968 = vmatprep.subr.bf16.mxu0 %v2409
        %2969 = vmatpush2.bf16.msra.mxu0 %v2408
        %2970 = vmatprep.subr.bf16.mxu0 %v2407
        %2971 = vmatpush2.bf16.msra.mxu0 %v2406
        %2972 = vmatprep.subr.bf16.mxu0 %v2405
        %2973 = vmatpush2.bf16.msra.mxu0 %v2404
        %2974 = vmatprep.subr.bf16.mxu0 %v2403
        %2975 = vmatpush2.bf16.msra.mxu0 %v2402
        %2976 = vmatprep.subr.bf16.mxu0 %v2401
        %2977 = vmatpush2.bf16.msra.mxu0 %v2400
        %2978 = vmatprep.subr.bf16.mxu0 %v2399
        %2979 = vmatpush2.bf16.msra.mxu0 %v2398
        %2980 = vmatprep.mubr.bf16.mxu0 %v1401
        %2981 = vmatmul.mubr.bf16.gmra.mxu0 %v1387
        %v2982 = vpop.f32.mrf.mxu0
        %v2983 = vadd.f32 %v2942, %v2982
        %v2984 = vpop.f32.mrf.mxu0
        %v2985 = vadd.f32 %v2944, %v2984
        %v2986 = vpop.f32.mrf.mxu0
        %v2987 = vpop.f32.mrf.mxu0
        %2988 = vdwg.mxu0
        %2989 = vmatprep.subr.bf16.mxu0 %v2429
        %2990 = vmatpush1.bf16.msra.mxu0 %v2428
        %2991 = vmatprep.subr.bf16.mxu0 %v2427
        %2992 = vmatpush1.bf16.msra.mxu0 %v2426
        %2993 = vmatprep.subr.bf16.mxu0 %v2425
        %2994 = vmatpush1.bf16.msra.mxu0 %v2424
        %2995 = vmatprep.subr.bf16.mxu0 %v2423
        %2996 = vmatpush1.bf16.msra.mxu0 %v2422
        %2997 = vmatprep.subr.bf16.mxu0 %v2421
        %2998 = vmatpush1.bf16.msra.mxu0 %v2420
        %2999 = vmatprep.subr.bf16.mxu0 %v2419
        %3000 = vmatpush1.bf16.msra.mxu0 %v2418
        %3001 = vmatprep.subr.bf16.mxu0 %v2417
        %3002 = vmatpush1.bf16.msra.mxu0 %v2416
        %3003 = vmatprep.subr.bf16.mxu0 %v2415
        %3004 = vmatpush1.bf16.msra.mxu0 %v2414
        %3005 = vmatprep.subr.bf16.mxu0 %v2445
        %3006 = vmatpush2.bf16.msra.mxu0 %v2444
        %3007 = vmatprep.subr.bf16.mxu0 %v2443
        %3008 = vmatpush2.bf16.msra.mxu0 %v2442
        %3009 = vmatprep.subr.bf16.mxu0 %v2441
        %3010 = vmatpush2.bf16.msra.mxu0 %v2440
        %3011 = vmatprep.subr.bf16.mxu0 %v2439
        %3012 = vmatpush2.bf16.msra.mxu0 %v2438
        %3013 = vmatprep.subr.bf16.mxu0 %v2437
        %3014 = vmatpush2.bf16.msra.mxu0 %v2436
        %3015 = vmatprep.subr.bf16.mxu0 %v2435
        %3016 = vmatpush2.bf16.msra.mxu0 %v2434
        %3017 = vmatprep.subr.bf16.mxu0 %v2433
        %3018 = vmatpush2.bf16.msra.mxu0 %v2432
        %3019 = vmatprep.subr.bf16.mxu0 %v2431
        %3020 = vmatpush2.bf16.msra.mxu0 %v2430
        %3021 = vmatprep.mubr.bf16.mxu0 %v1405
        %3022 = vmatmul.mubr.bf16.gmra.mxu0 %v1403
        %v3023 = vpop.f32.mrf.mxu0
        %v3024 = vadd.f32 %v2983, %v3023
        %v3025 = vpop.f32.mrf.mxu0
        %v3026 = vadd.f32 %v2985, %v3025
        %v3027 = vpop.f32.mrf.mxu0
        %v3028 = vpop.f32.mrf.mxu0
        %3029 = vdwg.mxu0
        %v3030 = vmax.f32 %v3024, 0.0
        %v3031 = vmax.f32 %v3026, 0.0
        %v3032 = vld [vmem:[#allocation15] sm:$0x3]
        %v3033 = vpack.c.bf16 %v3030, %v3030
        %v3034 = vpack.c.bf16 %v3031, %v3031
        %v3035 = vld [vmem:[%s399] sm:$0xf]
        %v3036 = vld [vmem:[%s399 + $0x4] sm:$0xf]
        %v3037 = vld [vmem:[%s399 + $0x8] sm:$0xf]
        %v3038 = vld [vmem:[%s399 + $0xc] sm:$0xf]
        %v3039 = vld [vmem:[%s399 + $0x10] sm:$0xf]
        %v3040 = vld [vmem:[%s399 + $0x14] sm:$0xf]
        %v3041 = vld [vmem:[%s399 + $0x18] sm:$0xf]
        %v3042 = vld [vmem:[%s399 + $0x1c] sm:$0xf]
        %v3043 = vld [vmem:[%s399 + $0x20] sm:$0xf]
        %v3044 = vld [vmem:[%s399 + $0x24] sm:$0xf]
        %v3045 = vld [vmem:[%s399 + $0x28] sm:$0xf]
        %v3046 = vld [vmem:[%s399 + $0x2c] sm:$0xf]
        %v3047 = vld [vmem:[%s399 + $0x30] sm:$0xf]
        %v3048 = vld [vmem:[%s399 + $0x34] sm:$0xf]
        %v3049 = vld [vmem:[%s399 + $0x38] sm:$0xf]
        %v3050 = vld [vmem:[%s399 + $0x3c] sm:$0xf]
        %v3051 = vld [vmem:[%s399 + $0x40] sm:$0xf]
        %v3052 = vld [vmem:[%s399 + $0x44] sm:$0xf]
        %v3053 = vld [vmem:[%s399 + $0x48] sm:$0xf]
        %v3054 = vld [vmem:[%s399 + $0x4c] sm:$0xf]
        %v3055 = vld [vmem:[%s399 + $0x50] sm:$0xf]
        %v3056 = vld [vmem:[%s399 + $0x54] sm:$0xf]
        %v3057 = vld [vmem:[%s399 + $0x58] sm:$0xf]
        %v3058 = vld [vmem:[%s399 + $0x5c] sm:$0xf]
        %v3059 = vld [vmem:[%s399 + $0x60] sm:$0xf]
        %v3060 = vld [vmem:[%s399 + $0x64] sm:$0xf]
        %v3061 = vld [vmem:[%s399 + $0x68] sm:$0xf]
        %v3062 = vld [vmem:[%s399 + $0x6c] sm:$0xf]
        %v3063 = vld [vmem:[%s399 + $0x70] sm:$0xf]
        %v3064 = vld [vmem:[%s399 + $0x74] sm:$0xf]
        %v3065 = vld [vmem:[%s399 + $0x78] sm:$0xf]
        %v3066 = vld [vmem:[%s399 + $0x7c] sm:$0xf]
        %v3099 = vunpack.c.l.b16 %v3035
        %v3100 = vunpack.c.l.b16 %v3036
        %v3101 = vunpack.c.l.b16 %v3037
        %v3102 = vunpack.c.l.b16 %v3038
        %v3103 = vunpack.c.l.b16 %v3039
        %v3104 = vunpack.c.l.b16 %v3040
        %v3105 = vunpack.c.l.b16 %v3041
        %v3106 = vunpack.c.l.b16 %v3042
        %v3107 = vunpack.c.l.b16 %v3043
        %v3108 = vunpack.c.l.b16 %v3044
        %v3109 = vunpack.c.l.b16 %v3045
        %v3110 = vunpack.c.l.b16 %v3046
        %v3111 = vunpack.c.l.b16 %v3047
        %v3112 = vunpack.c.l.b16 %v3048
        %v3113 = vunpack.c.l.b16 %v3049
        %v3114 = vunpack.c.l.b16 %v3050
        %v3115 = vunpack.c.l.b16 %v3051
        %v3116 = vunpack.c.l.b16 %v3052
        %v3117 = vunpack.c.l.b16 %v3053
        %v3118 = vunpack.c.l.b16 %v3054
        %v3119 = vunpack.c.l.b16 %v3055
        %v3120 = vunpack.c.l.b16 %v3056
        %v3121 = vunpack.c.l.b16 %v3057
        %v3122 = vunpack.c.l.b16 %v3058
        %v3123 = vunpack.c.l.b16 %v3059
        %v3124 = vunpack.c.l.b16 %v3060
        %v3125 = vunpack.c.l.b16 %v3061
        %v3126 = vunpack.c.l.b16 %v3062
        %v3127 = vunpack.c.l.b16 %v3063
        %v3128 = vunpack.c.l.b16 %v3064
        %v3129 = vunpack.c.l.b16 %v3065
        %v3130 = vunpack.c.l.b16 %v3066
        %v3131 = vpack.c.b16 %v3100, %v3099
        %v3132 = vpack.c.b16 %v3102, %v3101
        %v3133 = vpack.c.b16 %v3104, %v3103
        %v3134 = vpack.c.b16 %v3106, %v3105
        %v3135 = vpack.c.b16 %v3108, %v3107
        %v3136 = vpack.c.b16 %v3110, %v3109
        %v3137 = vpack.c.b16 %v3112, %v3111
        %v3138 = vpack.c.b16 %v3114, %v3113
        %v3139 = vpack.c.b16 %v3116, %v3115
        %v3140 = vpack.c.b16 %v3118, %v3117
        %v3141 = vpack.c.b16 %v3120, %v3119
        %v3142 = vpack.c.b16 %v3122, %v3121
        %v3143 = vpack.c.b16 %v3124, %v3123
        %v3144 = vpack.c.b16 %v3126, %v3125
        %v3145 = vpack.c.b16 %v3128, %v3127
        %v3146 = vpack.c.b16 %v3130, %v3129
        %3163 = vmatprep.subr.bf16.mxu0 0
        %3164 = vmatpush1.bf16.msra.mxu0 %v3138
        %3165 = vmatprep.subr.bf16.mxu0 0
        %3166 = vmatpush1.bf16.msra.mxu0 %v3137
        %3167 = vmatprep.subr.bf16.mxu0 0
        %3168 = vmatpush1.bf16.msra.mxu0 %v3136
        %3169 = vmatprep.subr.bf16.mxu0 0
        %3170 = vmatpush1.bf16.msra.mxu0 %v3135
        %3171 = vmatprep.subr.bf16.mxu0 0
        %3172 = vmatpush1.bf16.msra.mxu0 %v3134
        %3173 = vmatprep.subr.bf16.mxu0 0
        %3174 = vmatpush1.bf16.msra.mxu0 %v3133
        %3175 = vmatprep.subr.bf16.mxu0 0
        %3176 = vmatpush1.bf16.msra.mxu0 %v3132
        %3177 = vmatprep.subr.bf16.mxu0 0
        %3178 = vmatpush1.bf16.msra.mxu0 %v3131
        %3179 = vmatprep.subr.bf16.mxu0 0
        %3180 = vmatpush2.bf16.msra.mxu0 %v3146
        %3181 = vmatprep.subr.bf16.mxu0 0
        %3182 = vmatpush2.bf16.msra.mxu0 %v3145
        %3183 = vmatprep.subr.bf16.mxu0 0
        %3184 = vmatpush2.bf16.msra.mxu0 %v3144
        %3185 = vmatprep.subr.bf16.mxu0 0
        %3186 = vmatpush2.bf16.msra.mxu0 %v3143
        %3187 = vmatprep.subr.bf16.mxu0 0
        %3188 = vmatpush2.bf16.msra.mxu0 %v3142
        %3189 = vmatprep.subr.bf16.mxu0 0
        %3190 = vmatpush2.bf16.msra.mxu0 %v3141
        %3191 = vmatprep.subr.bf16.mxu0 0
        %3192 = vmatpush2.bf16.msra.mxu0 %v3140
        %3193 = vmatprep.subr.bf16.mxu0 0
        %3194 = vmatpush2.bf16.msra.mxu0 %v3139
        %3195 = vmatprep.mubr.bf16.mxu0 %v3034
        %3196 = vmatmul.mubr.bf16.gmra.mxu0 %v3033
        %v3197 = vpop.f32.mrf.mxu0
        %v3198 = vadd.f32 0.0, %v3197
        %v3199 = vpop.f32.mrf.mxu0
        %v3200 = vpop.f32.mrf.mxu0
        %v3201 = vpop.f32.mrf.mxu0
        %3202 = vdwg.mxu0
        %v3203 = vadd.f32 %v3032, %v3198
        %3204 = vst [vmem:[#allocation15] sm:$0x3] %v3203
        %p3205 = scmp.eq.s32.totalorder %s28, 3
        // Predicated region
        $region85: #{tpu_custom_call.1} parent=51 // pred_check
          %p3206 = pneg %p3205
        $region86: #{tpu_custom_call.1} parent=51 // pred_check_branch
          %3208 = sbr.rel (%p3206) target = $region88
        $region87: #{tpu_custom_call.1} parent=51 // pred_region
          %v3209 = vld [vmem:[#allocation15] sm:$0x3]
          %v3210 = vld [vmem:[#allocation14] sm:$0x1]
          %v3212 = vlaneseq
          %v3213 = vshrl.u32 %v3212, 7
          %v3214 = vsub.s32 0, %v3213
          %v3215 = vrot.slane %v3210, %v3214
          %v3217 = vadd.f32 %v3209, %v3215
          %3218 = vst [vmem:[#allocation15] sm:$0x3] %v3217
        $region88: #{tpu_custom_call.1} parent=51 // pred_fallthru
          _
        // Predicated region
        $region89: #{tpu_custom_call.1} parent=51 // pred_check
          %p3219 = pneg %p224
        $region90: #{tpu_custom_call.1} parent=51 // pred_check_branch
          %3221 = sbr.rel (%p3219) target = $region92
        $region91: #{tpu_custom_call.1} parent=51 // pred_region
          %s3223 = ssub.s32 32, 32
          %3224 = vsyncadd [#allocation5], %s3223
          %s3226 = sshll.u32 [#allocation15], 4
          %s3227 = int_to_ptr.vmem [resolvable:$true] %s3226
          %3229 = dma.vmem_to_hbm [thread:$0]  %s3227, 32, %s8, [#allocation5]
        $region92: #{tpu_custom_call.1} parent=51 // pred_fallthru
          _
        // Predicated region
        $region93: #{tpu_custom_call.1} parent=51 // pred_check
          %p3230 = pneg %p224
        $region94: #{tpu_custom_call.1} parent=51 // pred_check_branch
          %3232 = sbr.rel (%p3230) target = $region96
        $region95: #{tpu_custom_call.1} parent=51 // pred_region
          %3233 = dma.done [#allocation5], 32
        $region96: #{tpu_custom_call.1} parent=51 // pred_fallthru
          _
      $region52: #{tpu_custom_call.1} parent=5 // pred_fallthru
        _
      %p3234 = scmp.le.s32.totalorder 2, %s23
      // Predicated region
      $region97: #{tpu_custom_call.1} parent=5 // pred_check
        %p3235 = pneg %p3234
      $region98: #{tpu_custom_call.1} parent=5 // pred_check_branch
        %3237 = sbr.rel (%p3235) target = $region100
      $region99: #{tpu_custom_call.1} parent=5 // pred_region
        %s3238 = ssub.s32 %s23, 2
      $region100: #{tpu_custom_call.1} parent=5 // pred_fallthru
        _
    $region6: #{tpu_custom_call.1} parent=1 // loop_footer
      %s27 = sadd.s32 1, %s23
    $region7: #{tpu_custom_call.1} parent=1 // loop_footer_branch
      %22 = sbr.rel target = $region3
    $region8: #{tpu_custom_call.1} parent=1 // loop_exit
      _
    %3239 = vsyncpa [#allocation4], 1
    %s3240 = scalar_lea.sflag [#allocation4], 1
    %3241 = vsyncpa %s3240, 1
    %3242 = vsyncpa [#allocation7], 1
    %3243 = vsyncpa [#allocation10], 1
    %s3244 = scalar_lea.sflag [#allocation10], 1
    %3245 = vsyncpa %s3244, 1
    %3246 = vsyncpa [#allocation13], 1
    %s3247 = scalar_lea.sflag [#allocation13], 1
    %3248 = vsyncpa %s3247, 1
    %3249 = vsyncpa [#allocation5], 1
    %s3250 = scalar_lea.sflag [#allocation5], 1
    %3251 = vsyncpa %s3250, 1

</llo_original>
